<compile_context>
chip_gen: v7x
topology: tpu7x:2x2x1
jax: 0.10.0
libtpu: 0.0.40
codegen_flags: <defaults>
</compile_context>

<pallas_src>
import functools

import numpy as np
import jax
import jax.numpy as jnp
from jax.experimental import pallas as pl
from jax.experimental.pallas import tpu as pltpu


def attention_kernel(x_ref, wq_ref, wk_ref, wv_ref, wo_ref, bo_ref,
                     o_ref, acc_ref, *, q_tile, compute_dtype, approx_recip):
    qi = pl.program_id(1)
    h = pl.program_id(2)
    num_heads = pl.num_programs(2)

    x = x_ref[0].astype(compute_dtype)                       # (N, C)
    if q_tile == x_ref.shape[1]:
        xq = x                                               # single query tile
    else:
        start = pl.multiple_of(qi * q_tile, 8)
        xq = x_ref[0, pl.ds(start, q_tile), :].astype(compute_dtype)

    wq = wq_ref[h]                                           # (C, hd), scale folded in
    wk = wk_ref[h]                                           # (C, hd)
    wv = wv_ref[h]                                           # (C, hd)
    wo = wo_ref[h]                                           # (hd, C)

    # Per-head projections on the MXU, f32 accumulation.
    q = jnp.dot(xq, wq, preferred_element_type=jnp.float32).astype(compute_dtype)
    k = jnp.dot(x, wk, preferred_element_type=jnp.float32).astype(compute_dtype)
    v = jnp.dot(x, wv, preferred_element_type=jnp.float32).astype(compute_dtype)

    # Scores: contract the head dim of q against the head dim of k (no k.T).
    logits = jax.lax.dot_general(q, k, (((1,), (1,)), ((), ())),
                                 preferred_element_type=jnp.float32)   # (TQ, N)
    logits = logits - jnp.max(logits, axis=-1, keepdims=True)
    p = jnp.exp(logits)
    denom = jnp.sum(p, axis=-1, keepdims=True)
    if approx_recip:
        p = p * pl.reciprocal(denom, approx=True)            # EUP, frees VALU slots
    else:
        p = p / denom                                        # exact path (f32 check)

    ctx = jnp.dot(p.astype(compute_dtype), v,
                  preferred_element_type=jnp.float32)        # (TQ, hd)
    contrib = jnp.dot(ctx.astype(compute_dtype), wo,
                      preferred_element_type=jnp.float32)    # (TQ, C)

    @pl.when(h == 0)
    def _():
        acc_ref[...] = jnp.zeros_like(acc_ref)

    acc_ref[...] += contrib

    @pl.when(h == num_heads - 1)
    def _():
        o_ref[0] = (acc_ref[...] + bo_ref[0]).astype(o_ref.dtype)


def attention_forward(x, params, *, num_heads, compute_dtype=jnp.bfloat16):
    """ViT Attention forward: x (B, N, C) -> (B, N, C).

    params (all (in, out) layout, i.e. transposed vs torch nn.Linear):
      qkv_w (C, 3C)  with columns [q | k | v], proj_w (C, C), proj_b (1, C).
    """
    B, N, C = x.shape
    assert C % num_heads == 0
    hd = C // num_heads
    scale = hd ** (-0.5)

    qkv_w = params["qkv_w"].astype(jnp.float32)
    proj_w = params["proj_w"].astype(jnp.float32)
    proj_b = params["proj_b"].astype(jnp.float32)

    # Per-head weight stacks (done once, outside the kernel). The attention
    # scale is folded into W_q so the (N, N) logits never see a VPU multiply.
    def split_heads(w):                                   # (C, C) -> (nh, C, hd)
        return w.reshape(C, num_heads, hd).transpose(1, 0, 2)

    wq = split_heads(qkv_w[:, 0 * C:1 * C] * scale).astype(compute_dtype)
    wk = split_heads(qkv_w[:, 1 * C:2 * C]).astype(compute_dtype)
    wv = split_heads(qkv_w[:, 2 * C:3 * C]).astype(compute_dtype)
    wo = proj_w.reshape(num_heads, hd, C).astype(compute_dtype)

    # Query-row tiling: second "parallel" grid axis (caps per-step VMEM, gives
    # both v7x TensorCores work even at small B). Degenerates to one tile for
    # small / non-128-divisible sequence lengths.
    q_tile = 128 if (N > 128 and N % 128 == 0) else N
    num_q_tiles = N // q_tile

    approx_recip = np.dtype(compute_dtype) != np.dtype(np.float32)
    kernel = functools.partial(attention_kernel, q_tile=q_tile,
                               compute_dtype=compute_dtype,
                               approx_recip=approx_recip)

    w_itemsize = np.dtype(compute_dtype).itemsize
    cost = pl.CostEstimate(
        flops=int(2 * B * N * C * 3 * C              # qkv projection
                  + 4 * B * num_heads * N * N * hd   # q@k^T and attn@v
                  + 2 * B * N * C * C),              # output projection
        transcendentals=int(B * num_heads * N * N),
        bytes_accessed=int(2 * B * N * C * 4 + 4 * C * C * w_itemsize + C * 4),
    )

    def build(single_buffer_weights):
        def const_spec(shape):
            zero = lambda b, qi, h: (0,) * len(shape)
            if single_buffer_weights:
                # Constant index_map -> single buffer is enough (halves weight VMEM).
                return pl.BlockSpec(shape, zero, pipeline_mode=pl.Buffered(1))
            return pl.BlockSpec(shape, zero)

        grid_spec = pltpu.PrefetchScalarGridSpec(
            num_scalar_prefetch=0,
            grid=(B, num_q_tiles, num_heads),
            in_specs=[
                pl.BlockSpec((1, N, C), lambda b, qi, h: (b, 0, 0)),   # x
                const_spec((num_heads, C, hd)),                        # wq (scaled)
                const_spec((num_heads, C, hd)),                        # wk
                const_spec((num_heads, C, hd)),                        # wv
                const_spec((num_heads, hd, C)),                        # wo
                const_spec((1, C)),                                    # proj bias
            ],
            out_specs=pl.BlockSpec((1, q_tile, C), lambda b, qi, h: (b, qi, 0)),
            scratch_shapes=[pltpu.VMEM((q_tile, C), jnp.float32)],
        )
        return pl.pallas_call(
            kernel,
            out_shape=jax.ShapeDtypeStruct((B, N, C), x.dtype),
            grid_spec=grid_spec,
            compiler_params=pltpu.CompilerParams(
                dimension_semantics=("parallel", "parallel", "arbitrary"),
                vmem_limit_bytes=64 * 1024 * 1024),
            cost_estimate=cost,
        )

    operands = (x, wq, wk, wv, wo, proj_b)
    try:
        return build(single_buffer_weights=True)(*operands)
    except Exception:
        # Some Pallas versions reject buffer_count=1; default double-buffering
        # is functionally identical (just 2x VMEM for the constant weights).
        return build(single_buffer_weights=False)(*operands)


def reference_attention(x, params, *, num_heads):
    B, N, C = x.shape
    hd = C // num_heads
    scale = hd ** (-0.5)
    qkv = x @ params["qkv_w"]                                    # (B, N, 3C)
    qkv = qkv.reshape(B, N, 3, num_heads, hd).transpose(2, 0, 3, 1, 4)
    q, k, v = qkv[0], qkv[1], qkv[2]                             # (B, nh, N, hd)
    attn = jax.nn.softmax((q @ jnp.swapaxes(k, -2, -1)) * scale, axis=-1)
    out = (attn @ v).transpose(0, 2, 1, 3).reshape(B, N, C)
    return out @ params["proj_w"] + params["proj_b"][0]


if __name__ == "__main__":
    B, N, C = 2, 8, 32
    num_heads = 4

    key = jax.random.PRNGKey(0)
    ks = jax.random.split(key, 4)
    # Deterministic synthetic parameters, (in, out) layout: y = x @ W + b.
    params = {
        "qkv_w": 0.05 * jax.random.normal(ks[0], (C, 3 * C), jnp.float32),
        "proj_w": 0.05 * jax.random.normal(ks[1], (C, C), jnp.float32),
        "proj_b": 0.01 * jax.random.normal(ks[2], (1, C), jnp.float32),
    }
    x = jax.random.normal(ks[3], (B, N, C), jnp.float32)

    ref = reference_attention(x, params, num_heads=num_heads)

    # Exact check: f32 matmul operands, exact softmax division.
    out_f32 = jax.block_until_ready(
        attention_forward(x, params, num_heads=num_heads,
                          compute_dtype=jnp.float32))
    assert jnp.allclose(out_f32, ref, atol=1e-4, rtol=1e-4), "f32 kernel mismatch"

    # Production config: bf16 MXU operands, f32 accumulation, approx reciprocal.
    out_bf16 = jax.block_until_ready(
        attention_forward(x, params, num_heads=num_heads,
                          compute_dtype=jnp.bfloat16))
    assert jnp.allclose(out_bf16, ref, atol=3e-2, rtol=3e-2), "bf16 kernel mismatch"

    print("KERNEL_OK")
</pallas_src>

<mosaic_0001>
module attributes {stable_mosaic.version = 11 : i64} {
  func.func @attention_kernel(%arg0: i32, %arg1: i32, %arg2: i32, %arg3: memref<1x8x32xf32, #tpu.memory_space<vmem>>, %arg4: memref<4x32x8xf32, #tpu.memory_space<vmem>>, %arg5: memref<4x32x8xf32, #tpu.memory_space<vmem>>, %arg6: memref<4x32x8xf32, #tpu.memory_space<vmem>>, %arg7: memref<4x8x32xf32, #tpu.memory_space<vmem>>, %arg8: memref<1x32xf32, #tpu.memory_space<vmem>>, %arg9: memref<1x8x32xf32, #tpu.memory_space<vmem>>, %arg10: memref<8x32xf32, #tpu.memory_space<vmem>>) attributes {dimension_semantics = [#tpu.dimension_semantics<parallel>, #tpu.dimension_semantics<parallel>, #tpu.dimension_semantics<arbitrary>], iteration_bounds = array<i64: 2, 1, 4>, scalar_prefetch = 0 : i64, scratch_operands = 1 : i64, tpu.core_type = #tpu.core_type<tc>, window_params = [{transform_indices = @transform_0, window_bounds = array<i64: 1, 8, 32>}, {pipeline_mode = #tpu.pipeline_mode<synchronous>, transform_indices = @transform_1, window_bounds = array<i64: 4, 32, 8>}, {pipeline_mode = #tpu.pipeline_mode<synchronous>, transform_indices = @transform_2, window_bounds = array<i64: 4, 32, 8>}, {pipeline_mode = #tpu.pipeline_mode<synchronous>, transform_indices = @transform_3, window_bounds = array<i64: 4, 32, 8>}, {pipeline_mode = #tpu.pipeline_mode<synchronous>, transform_indices = @transform_4, window_bounds = array<i64: 4, 8, 32>}, {pipeline_mode = #tpu.pipeline_mode<synchronous>, transform_indices = @transform_5, window_bounds = array<i64: 1, 32>}, {transform_indices = @transform_6, window_bounds = array<i64: 1, 8, 32>}]} {
    %c0 = arith.constant 0 : index
    %c0_0 = arith.constant 0 : index
    %c0_1 = arith.constant 0 : index
    %0 = vector.load %arg3[%c0, %c0_0, %c0_1] : memref<1x8x32xf32, #tpu.memory_space<vmem>>, vector<1x8x32xf32>
    %1 = vector.shape_cast %0 : vector<1x8x32xf32> to vector<8x32xf32>
    %2 = arith.index_cast %arg2 : i32 to index
    %c0_2 = arith.constant 0 : index
    %c0_3 = arith.constant 0 : index
    %3 = vector.load %arg4[%2, %c0_2, %c0_3] : memref<4x32x8xf32, #tpu.memory_space<vmem>>, vector<1x32x8xf32>
    %4 = vector.shape_cast %3 : vector<1x32x8xf32> to vector<32x8xf32>
    %5 = arith.index_cast %arg2 : i32 to index
    %c0_4 = arith.constant 0 : index
    %c0_5 = arith.constant 0 : index
    %6 = vector.load %arg5[%5, %c0_4, %c0_5] : memref<4x32x8xf32, #tpu.memory_space<vmem>>, vector<1x32x8xf32>
    %7 = vector.shape_cast %6 : vector<1x32x8xf32> to vector<32x8xf32>
    %8 = arith.index_cast %arg2 : i32 to index
    %c0_6 = arith.constant 0 : index
    %c0_7 = arith.constant 0 : index
    %9 = vector.load %arg6[%8, %c0_6, %c0_7] : memref<4x32x8xf32, #tpu.memory_space<vmem>>, vector<1x32x8xf32>
    %10 = vector.shape_cast %9 : vector<1x32x8xf32> to vector<32x8xf32>
    %11 = arith.index_cast %arg2 : i32 to index
    %c0_8 = arith.constant 0 : index
    %c0_9 = arith.constant 0 : index
    %12 = vector.load %arg7[%11, %c0_8, %c0_9] : memref<4x8x32xf32, #tpu.memory_space<vmem>>, vector<1x8x32xf32>
    %13 = vector.shape_cast %12 : vector<1x8x32xf32> to vector<8x32xf32>
    %cst = arith.constant dense<0.000000e+00> : vector<8x8xf32>
    %14 = tpu.matmul %1, %4, %cst {dimension_numbers = #tpu.dot_dimension_numbers<[1], [0], [0], [1], [0, 0, 1, 1], [], []>} : vector<8x32xf32>, vector<32x8xf32>, vector<8x8xf32> -> vector<8x8xf32>
    %cst_10 = arith.constant dense<0.000000e+00> : vector<8x8xf32>
    %15 = tpu.matmul %1, %7, %cst_10 {dimension_numbers = #tpu.dot_dimension_numbers<[1], [0], [0], [1], [0, 0, 1, 1], [], []>} : vector<8x32xf32>, vector<32x8xf32>, vector<8x8xf32> -> vector<8x8xf32>
    %cst_11 = arith.constant dense<0.000000e+00> : vector<8x8xf32>
    %16 = tpu.matmul %1, %10, %cst_11 {dimension_numbers = #tpu.dot_dimension_numbers<[1], [0], [0], [1], [0, 0, 1, 1], [], []>} : vector<8x32xf32>, vector<32x8xf32>, vector<8x8xf32> -> vector<8x8xf32>
    %cst_12 = arith.constant dense<0.000000e+00> : vector<8x8xf32>
    %17 = tpu.matmul %14, %15, %cst_12 {dimension_numbers = #tpu.dot_dimension_numbers<[1], [1], [0], [0], [0, 0, 1, 0], [], []>} : vector<8x8xf32>, vector<8x8xf32>, vector<8x8xf32> -> vector<8x8xf32>
    %cst_13 = arith.constant dense<0xFF800000> : vector<8xf32>
    %18 = vector.multi_reduction <maximumf>, %17, %cst_13 [1] : vector<8x8xf32> to vector<8xf32>
    %19 = vector.shape_cast %18 : vector<8xf32> to vector<8x1xf32>
    %20 = vector.broadcast %19 : vector<8x1xf32> to vector<8x8xf32>
    %21 = arith.subf %17, %20 : vector<8x8xf32>
    %22 = math.exp %21 : vector<8x8xf32>
    %cst_14 = arith.constant dense<0.000000e+00> : vector<8xf32>
    %23 = vector.multi_reduction <add>, %22, %cst_14 [1] : vector<8x8xf32> to vector<8xf32>
    %24 = vector.shape_cast %23 : vector<8xf32> to vector<8x1xf32>
    %25 = vector.broadcast %24 : vector<8x1xf32> to vector<8x8xf32>
    %26 = arith.divf %22, %25 : vector<8x8xf32>
    %cst_15 = arith.constant dense<0.000000e+00> : vector<8x8xf32>
    %27 = tpu.matmul %26, %16, %cst_15 {dimension_numbers = #tpu.dot_dimension_numbers<[1], [0], [0], [1], [0, 0, 1, 1], [], []>} : vector<8x8xf32>, vector<8x8xf32>, vector<8x8xf32> -> vector<8x8xf32>
    %cst_16 = arith.constant dense<0.000000e+00> : vector<8x32xf32>
    %28 = tpu.matmul %27, %13, %cst_16 {dimension_numbers = #tpu.dot_dimension_numbers<[1], [0], [0], [1], [0, 0, 1, 1], [], []>} : vector<8x8xf32>, vector<8x32xf32>, vector<8x32xf32> -> vector<8x32xf32>
    %c0_i32 = arith.constant 0 : i32
    %29 = arith.cmpi eq, %arg2, %c0_i32 : i32
    %30 = arith.extui %29 : i1 to i32
    %c0_i32_17 = arith.constant 0 : i32
    %31 = arith.cmpi ne, %30, %c0_i32_17 : i32
    scf.if %31 {
      %cst_23 = arith.constant 0.000000e+00 : f32
      %38 = vector.broadcast %cst_23 : f32 to vector<8x32xf32>
      %c0_24 = arith.constant 0 : index
      %c0_25 = arith.constant 0 : index
      %39 = vector.load %arg10[%c0_24, %c0_25] : memref<8x32xf32, #tpu.memory_space<vmem>>, vector<8x32xf32>
      tpu.vector_store %arg10[%c0_24, %c0_25], %38 {strides = array<i32>} : memref<8x32xf32, #tpu.memory_space<vmem>>, vector<8x32xf32>,
    } else {
    }
    %c0_18 = arith.constant 0 : index
    %c0_19 = arith.constant 0 : index
    %32 = vector.load %arg10[%c0_18, %c0_19] : memref<8x32xf32, #tpu.memory_space<vmem>>, vector<8x32xf32>
    %33 = arith.addf %32, %28 : vector<8x32xf32>
    %c0_20 = arith.constant 0 : index
    %c0_21 = arith.constant 0 : index
    %34 = vector.load %arg10[%c0_20, %c0_21] : memref<8x32xf32, #tpu.memory_space<vmem>>, vector<8x32xf32>
    tpu.vector_store %arg10[%c0_20, %c0_21], %33 {strides = array<i32>} : memref<8x32xf32, #tpu.memory_space<vmem>>, vector<8x32xf32>,
    %c3_i32 = arith.constant 3 : i32
    %35 = arith.cmpi eq, %arg2, %c3_i32 : i32
    %36 = arith.extui %35 : i1 to i32
    %c0_i32_22 = arith.constant 0 : i32
    %37 = arith.cmpi ne, %36, %c0_i32_22 : i32
    scf.if %37 {
      %c0_23 = arith.constant 0 : index
      %c0_24 = arith.constant 0 : index
      %38 = vector.load %arg10[%c0_23, %c0_24] : memref<8x32xf32, #tpu.memory_space<vmem>>, vector<8x32xf32>
      %c0_25 = arith.constant 0 : index
      %c0_26 = arith.constant 0 : index
      %39 = vector.load %arg8[%c0_25, %c0_26] : memref<1x32xf32, #tpu.memory_space<vmem>>, vector<1x32xf32>
      %40 = vector.shape_cast %39 : vector<1x32xf32> to vector<32xf32>
      %41 = vector.shape_cast %40 : vector<32xf32> to vector<1x32xf32>
      %42 = vector.broadcast %41 : vector<1x32xf32> to vector<8x32xf32>
      %43 = arith.addf %38, %42 : vector<8x32xf32>
      %c0_27 = arith.constant 0 : index
      %c0_28 = arith.constant 0 : index
      %c0_29 = arith.constant 0 : index
      %44 = vector.load %arg9[%c0_27, %c0_28, %c0_29] : memref<1x8x32xf32, #tpu.memory_space<vmem>>, vector<1x8x32xf32>
      %45 = vector.shape_cast %44 : vector<1x8x32xf32> to vector<8x32xf32>
      %46 = vector.shape_cast %43 : vector<8x32xf32> to vector<1x8x32xf32>
      tpu.vector_store %arg9[%c0_27, %c0_28, %c0_29], %46 {strides = array<i32>} : memref<1x8x32xf32, #tpu.memory_space<vmem>>, vector<1x8x32xf32>,
    } else {
    }
    return
  }
  func.func @transform_0(%arg0: i32, %arg1: i32, %arg2: i32) -> (i32, i32, i32) {
    %c0_i32 = arith.constant 0 : i32
    %c0_i32_0 = arith.constant 0 : i32
    %c0_i32_1 = arith.constant 0 : i32
    return %arg0, %c0_i32, %c0_i32_0 : i32, i32, i32
  }
  func.func @transform_1(%arg0: i32, %arg1: i32, %arg2: i32) -> (i32, i32, i32) {
    %c0_i32 = arith.constant 0 : i32
    %c0_i32_0 = arith.constant 0 : i32
    %c0_i32_1 = arith.constant 0 : i32
    %c0_i32_2 = arith.constant 0 : i32
    return %c0_i32, %c0_i32_0, %c0_i32_1 : i32, i32, i32
  }
  func.func @transform_2(%arg0: i32, %arg1: i32, %arg2: i32) -> (i32, i32, i32) {
    %c0_i32 = arith.constant 0 : i32
    %c0_i32_0 = arith.constant 0 : i32
    %c0_i32_1 = arith.constant 0 : i32
    %c0_i32_2 = arith.constant 0 : i32
    return %c0_i32, %c0_i32_0, %c0_i32_1 : i32, i32, i32
  }
  func.func @transform_3(%arg0: i32, %arg1: i32, %arg2: i32) -> (i32, i32, i32) {
    %c0_i32 = arith.constant 0 : i32
    %c0_i32_0 = arith.constant 0 : i32
    %c0_i32_1 = arith.constant 0 : i32
    %c0_i32_2 = arith.constant 0 : i32
    return %c0_i32, %c0_i32_0, %c0_i32_1 : i32, i32, i32
  }
  func.func @transform_4(%arg0: i32, %arg1: i32, %arg2: i32) -> (i32, i32, i32) {
    %c0_i32 = arith.constant 0 : i32
    %c0_i32_0 = arith.constant 0 : i32
    %c0_i32_1 = arith.constant 0 : i32
    %c0_i32_2 = arith.constant 0 : i32
    return %c0_i32, %c0_i32_0, %c0_i32_1 : i32, i32, i32
  }
  func.func @transform_5(%arg0: i32, %arg1: i32, %arg2: i32) -> (i32, i32) {
    %c0_i32 = arith.constant 0 : i32
    %c0_i32_0 = arith.constant 0 : i32
    %c0_i32_1 = arith.constant 0 : i32
    return %c0_i32, %c0_i32_0 : i32, i32
  }
  func.func @transform_6(%arg0: i32, %arg1: i32, %arg2: i32) -> (i32, i32, i32) {
    %c0_i32 = arith.constant 0 : i32
    %c0_i32_0 = arith.constant 0 : i32
    return %arg0, %arg1, %c0_i32 : i32, i32, i32
  }
}

module attributes {stable_mosaic.version = 11 : i64} {
  func.func @attention_kernel(%arg0: i32, %arg1: i32, %arg2: i32, %arg3: memref<1x8x32xf32, #tpu.memory_space<vmem>>, %arg4: memref<4x32x8xf32, #tpu.memory_space<vmem>>, %arg5: memref<4x32x8xf32, #tpu.memory_space<vmem>>, %arg6: memref<4x32x8xf32, #tpu.memory_space<vmem>>, %arg7: memref<4x8x32xf32, #tpu.memory_space<vmem>>, %arg8: memref<1x32xf32, #tpu.memory_space<vmem>>, %arg9: memref<1x8x32xf32, #tpu.memory_space<vmem>>, %arg10: memref<8x32xf32, #tpu.memory_space<vmem>>) attributes {dimension_semantics = [#tpu.dimension_semantics<parallel>, #tpu.dimension_semantics<parallel>, #tpu.dimension_semantics<arbitrary>], iteration_bounds = array<i64: 2, 1, 4>, scalar_prefetch = 0 : i64, scratch_operands = 1 : i64, tpu.core_type = #tpu.core_type<tc>, window_params = [{transform_indices = @transform_0, window_bounds = array<i64: 1, 8, 32>}, {pipeline_mode = #tpu.pipeline_mode<synchronous>, transform_indices = @transform_1, window_bounds = array<i64: 4, 32, 8>}, {pipeline_mode = #tpu.pipeline_mode<synchronous>, transform_indices = @transform_2, window_bounds = array<i64: 4, 32, 8>}, {pipeline_mode = #tpu.pipeline_mode<synchronous>, transform_indices = @transform_3, window_bounds = array<i64: 4, 32, 8>}, {pipeline_mode = #tpu.pipeline_mode<synchronous>, transform_indices = @transform_4, window_bounds = array<i64: 4, 8, 32>}, {pipeline_mode = #tpu.pipeline_mode<synchronous>, transform_indices = @transform_5, window_bounds = array<i64: 1, 32>}, {transform_indices = @transform_6, window_bounds = array<i64: 1, 8, 32>}]} {
    %c0 = arith.constant 0 : index
    %c0_0 = arith.constant 0 : index
    %c0_1 = arith.constant 0 : index
    %0 = vector.load %arg3[%c0, %c0_0, %c0_1] : memref<1x8x32xf32, #tpu.memory_space<vmem>>, vector<1x8x32xf32>
    %1 = vector.shape_cast %0 : vector<1x8x32xf32> to vector<8x32xf32>
    %2 = arith.index_cast %arg2 : i32 to index
    %c0_2 = arith.constant 0 : index
    %c0_3 = arith.constant 0 : index
    %3 = vector.load %arg4[%2, %c0_2, %c0_3] : memref<4x32x8xf32, #tpu.memory_space<vmem>>, vector<1x32x8xf32>
    %4 = vector.shape_cast %3 : vector<1x32x8xf32> to vector<32x8xf32>
    %5 = arith.index_cast %arg2 : i32 to index
    %c0_4 = arith.constant 0 : index
    %c0_5 = arith.constant 0 : index
    %6 = vector.load %arg5[%5, %c0_4, %c0_5] : memref<4x32x8xf32, #tpu.memory_space<vmem>>, vector<1x32x8xf32>
    %7 = vector.shape_cast %6 : vector<1x32x8xf32> to vector<32x8xf32>
    %8 = arith.index_cast %arg2 : i32 to index
    %c0_6 = arith.constant 0 : index
    %c0_7 = arith.constant 0 : index
    %9 = vector.load %arg6[%8, %c0_6, %c0_7] : memref<4x32x8xf32, #tpu.memory_space<vmem>>, vector<1x32x8xf32>
    %10 = vector.shape_cast %9 : vector<1x32x8xf32> to vector<32x8xf32>
    %11 = arith.index_cast %arg2 : i32 to index
    %c0_8 = arith.constant 0 : index
    %c0_9 = arith.constant 0 : index
    %12 = vector.load %arg7[%11, %c0_8, %c0_9] : memref<4x8x32xf32, #tpu.memory_space<vmem>>, vector<1x8x32xf32>
    %13 = vector.shape_cast %12 : vector<1x8x32xf32> to vector<8x32xf32>
    %cst = arith.constant dense<0.000000e+00> : vector<8x8xf32>
    %14 = tpu.matmul %1, %4, %cst {dimension_numbers = #tpu.dot_dimension_numbers<[1], [0], [0], [1], [0, 0, 1, 1], [], []>} : vector<8x32xf32>, vector<32x8xf32>, vector<8x8xf32> -> vector<8x8xf32>
    %cst_10 = arith.constant dense<0.000000e+00> : vector<8x8xf32>
    %15 = tpu.matmul %1, %7, %cst_10 {dimension_numbers = #tpu.dot_dimension_numbers<[1], [0], [0], [1], [0, 0, 1, 1], [], []>} : vector<8x32xf32>, vector<32x8xf32>, vector<8x8xf32> -> vector<8x8xf32>
    %cst_11 = arith.constant dense<0.000000e+00> : vector<8x8xf32>
    %16 = tpu.matmul %1, %10, %cst_11 {dimension_numbers = #tpu.dot_dimension_numbers<[1], [0], [0], [1], [0, 0, 1, 1], [], []>} : vector<8x32xf32>, vector<32x8xf32>, vector<8x8xf32> -> vector<8x8xf32>
    %cst_12 = arith.constant dense<0.000000e+00> : vector<8x8xf32>
    %17 = tpu.matmul %14, %15, %cst_12 {dimension_numbers = #tpu.dot_dimension_numbers<[1], [1], [0], [0], [0, 0, 1, 0], [], []>} : vector<8x8xf32>, vector<8x8xf32>, vector<8x8xf32> -> vector<8x8xf32>
    %cst_13 = arith.constant dense<0xFF800000> : vector<8xf32>
    %18 = vector.multi_reduction <maximumf>, %17, %cst_13 [1] : vector<8x8xf32> to vector<8xf32>
    %19 = vector.shape_cast %18 : vector<8xf32> to vector<8x1xf32>
    %20 = vector.broadcast %19 : vector<8x1xf32> to vector<8x8xf32>
    %21 = arith.subf %17, %20 : vector<8x8xf32>
    %22 = math.exp %21 : vector<8x8xf32>
    %cst_14 = arith.constant dense<0.000000e+00> : vector<8xf32>
    %23 = vector.multi_reduction <add>, %22, %cst_14 [1] : vector<8x8xf32> to vector<8xf32>
    %24 = vector.shape_cast %23 : vector<8xf32> to vector<8x1xf32>
    %25 = vector.broadcast %24 : vector<8x1xf32> to vector<8x8xf32>
    %26 = arith.divf %22, %25 : vector<8x8xf32>
    %cst_15 = arith.constant dense<0.000000e+00> : vector<8x8xf32>
    %27 = tpu.matmul %26, %16, %cst_15 {dimension_numbers = #tpu.dot_dimension_numbers<[1], [0], [0], [1], [0, 0, 1, 1], [], []>} : vector<8x8xf32>, vector<8x8xf32>, vector<8x8xf32> -> vector<8x8xf32>
    %cst_16 = arith.constant dense<0.000000e+00> : vector<8x32xf32>
    %28 = tpu.matmul %27, %13, %cst_16 {dimension_numbers = #tpu.dot_dimension_numbers<[1], [0], [0], [1], [0, 0, 1, 1], [], []>} : vector<8x8xf32>, vector<8x32xf32>, vector<8x32xf32> -> vector<8x32xf32>
    %c0_i32 = arith.constant 0 : i32
    %29 = arith.cmpi eq, %arg2, %c0_i32 : i32
    %30 = arith.extui %29 : i1 to i32
    %c0_i32_17 = arith.constant 0 : i32
    %31 = arith.cmpi ne, %30, %c0_i32_17 : i32
    scf.if %31 {
      %cst_23 = arith.constant 0.000000e+00 : f32
      %38 = vector.broadcast %cst_23 : f32 to vector<8x32xf32>
      %c0_24 = arith.constant 0 : index
      %c0_25 = arith.constant 0 : index
      %39 = vector.load %arg10[%c0_24, %c0_25] : memref<8x32xf32, #tpu.memory_space<vmem>>, vector<8x32xf32>
      tpu.vector_store %arg10[%c0_24, %c0_25], %38 {strides = array<i32>} : memref<8x32xf32, #tpu.memory_space<vmem>>, vector<8x32xf32>,
    } else {
    }
    %c0_18 = arith.constant 0 : index
    %c0_19 = arith.constant 0 : index
    %32 = vector.load %arg10[%c0_18, %c0_19] : memref<8x32xf32, #tpu.memory_space<vmem>>, vector<8x32xf32>
    %33 = arith.addf %32, %28 : vector<8x32xf32>
    %c0_20 = arith.constant 0 : index
    %c0_21 = arith.constant 0 : index
    %34 = vector.load %arg10[%c0_20, %c0_21] : memref<8x32xf32, #tpu.memory_space<vmem>>, vector<8x32xf32>
    tpu.vector_store %arg10[%c0_20, %c0_21], %33 {strides = array<i32>} : memref<8x32xf32, #tpu.memory_space<vmem>>, vector<8x32xf32>,
    %c3_i32 = arith.constant 3 : i32
    %35 = arith.cmpi eq, %arg2, %c3_i32 : i32
    %36 = arith.extui %35 : i1 to i32
    %c0_i32_22 = arith.constant 0 : i32
    %37 = arith.cmpi ne, %36, %c0_i32_22 : i32
    scf.if %37 {
      %c0_23 = arith.constant 0 : index
      %c0_24 = arith.constant 0 : index
      %38 = vector.load %arg10[%c0_23, %c0_24] : memref<8x32xf32, #tpu.memory_space<vmem>>, vector<8x32xf32>
      %c0_25 = arith.constant 0 : index
      %c0_26 = arith.constant 0 : index
      %39 = vector.load %arg8[%c0_25, %c0_26] : memref<1x32xf32, #tpu.memory_space<vmem>>, vector<1x32xf32>
      %40 = vector.shape_cast %39 : vector<1x32xf32> to vector<32xf32>
      %41 = vector.shape_cast %40 : vector<32xf32> to vector<1x32xf32>
      %42 = vector.broadcast %41 : vector<1x32xf32> to vector<8x32xf32>
      %43 = arith.addf %38, %42 : vector<8x32xf32>
      %c0_27 = arith.constant 0 : index
      %c0_28 = arith.constant 0 : index
      %c0_29 = arith.constant 0 : index
      %44 = vector.load %arg9[%c0_27, %c0_28, %c0_29] : memref<1x8x32xf32, #tpu.memory_space<vmem>>, vector<1x8x32xf32>
      %45 = vector.shape_cast %44 : vector<1x8x32xf32> to vector<8x32xf32>
      %46 = vector.shape_cast %43 : vector<8x32xf32> to vector<1x8x32xf32>
      tpu.vector_store %arg9[%c0_27, %c0_28, %c0_29], %46 {strides = array<i32>} : memref<1x8x32xf32, #tpu.memory_space<vmem>>, vector<1x8x32xf32>,
    } else {
    }
    return
  }
  func.func @transform_0(%arg0: i32, %arg1: i32, %arg2: i32) -> (i32, i32, i32) {
    %c0_i32 = arith.constant 0 : i32
    %c0_i32_0 = arith.constant 0 : i32
    %c0_i32_1 = arith.constant 0 : i32
    return %arg0, %c0_i32, %c0_i32_0 : i32, i32, i32
  }
  func.func @transform_1(%arg0: i32, %arg1: i32, %arg2: i32) -> (i32, i32, i32) {
    %c0_i32 = arith.constant 0 : i32
    %c0_i32_0 = arith.constant 0 : i32
    %c0_i32_1 = arith.constant 0 : i32
    %c0_i32_2 = arith.constant 0 : i32
    return %c0_i32, %c0_i32_0, %c0_i32_1 : i32, i32, i32
  }
  func.func @transform_2(%arg0: i32, %arg1: i32, %arg2: i32) -> (i32, i32, i32) {
    %c0_i32 = arith.constant 0 : i32
    %c0_i32_0 = arith.constant 0 : i32
    %c0_i32_1 = arith.constant 0 : i32
    %c0_i32_2 = arith.constant 0 : i32
    return %c0_i32, %c0_i32_0, %c0_i32_1 : i32, i32, i32
  }
  func.func @transform_3(%arg0: i32, %arg1: i32, %arg2: i32) -> (i32, i32, i32) {
    %c0_i32 = arith.constant 0 : i32
    %c0_i32_0 = arith.constant 0 : i32
    %c0_i32_1 = arith.constant 0 : i32
    %c0_i32_2 = arith.constant 0 : i32
    return %c0_i32, %c0_i32_0, %c0_i32_1 : i32, i32, i32
  }
  func.func @transform_4(%arg0: i32, %arg1: i32, %arg2: i32) -> (i32, i32, i32) {
    %c0_i32 = arith.constant 0 : i32
    %c0_i32_0 = arith.constant 0 : i32
    %c0_i32_1 = arith.constant 0 : i32
    %c0_i32_2 = arith.constant 0 : i32
    return %c0_i32, %c0_i32_0, %c0_i32_1 : i32, i32, i32
  }
  func.func @transform_5(%arg0: i32, %arg1: i32, %arg2: i32) -> (i32, i32) {
    %c0_i32 = arith.constant 0 : i32
    %c0_i32_0 = arith.constant 0 : i32
    %c0_i32_1 = arith.constant 0 : i32
    return %c0_i32, %c0_i32_0 : i32, i32
  }
  func.func @transform_6(%arg0: i32, %arg1: i32, %arg2: i32) -> (i32, i32, i32) {
    %c0_i32 = arith.constant 0 : i32
    %c0_i32_0 = arith.constant 0 : i32
    return %arg0, %arg1, %c0_i32 : i32, i32, i32
  }
}

</mosaic_0001>

<llo_original>
// kernel: tpu_custom_call.1
$region0: #{tpu_custom_call.1}
  #allocation0 [shape = 'u32[]', space=smem, size = 0x4, offset = 0x4, fixed_abs, tag = 'smem constant byte address 0x4 - core index']
  #allocation1 [shape = 'u32[144,128]{1,0:T(1,128)}', space=vmem, size = 0x12000, scoped, tag = 'internal scratch']
  #allocation2 [shape = 'f32[8,32]{1,0:T(8,128)}', space=vmem, size = 0x1000, scoped, tag = 'scratch operand']
  %s0 = inlined_call_operand.hbm [shape: f32[2,8,32], index: 0, kind: input, shape index: {}]
  %s1 = inlined_call_operand.hbm [shape: f32[4,32,8], index: 1, kind: input, shape index: {}]
  %s2 = inlined_call_operand.hbm [shape: f32[4,32,8], index: 2, kind: input, shape index: {}]
  %s3 = inlined_call_operand.hbm [shape: f32[4,32,8], index: 3, kind: input, shape index: {}]
  %s4 = inlined_call_operand.hbm [shape: f32[4,8,32], index: 4, kind: input, shape index: {}]
  %s5 = inlined_call_operand.hbm [shape: f32[1,32], index: 5, kind: input, shape index: {}]
  %s6 = inlined_call_operand.hbm [shape: f32[2,8,32], index: 6, kind: output, shape index: {}]
  %s7 = sld [smem:[#allocation0]]
  $region89: #{tpu_custom_call.1} parent=0
    _
  %s9 = ssub.s32 1, %s7
  %s10 = scalar_select 0, %s9, %s7
  $region1: #{tpu_custom_call.1} parent=0
    #allocation3 [shape = 'u8[8192]{0}', space=vmem, size = 0x2000, scoped, tag = 'input window, operand 0']
    #allocation4 [shape = 's32[2]{0}', space=sflag, size = 0x8, scoped, tag = 'scoped memory for tpu_custom_call.1']
    #allocation5 [shape = 's32[2]{0}', space=sflag, size = 0x8, scoped, tag = 'scoped memory for tpu_custom_call.1']
    #allocation6 [shape = 'u8[65536]{0}', space=vmem, size = 0x10000, scoped, tag = 'input window, operand 1, single buffered']
    #allocation7 [shape = 's32[1]{0}', space=sflag, size = 0x4, scoped, tag = 'scoped memory for tpu_custom_call.1']
    #allocation8 [shape = 'u8[65536]{0}', space=vmem, size = 0x10000, scoped, tag = 'input window, operand 2, single buffered']
    #allocation9 [shape = 'u8[65536]{0}', space=vmem, size = 0x10000, scoped, tag = 'input window, operand 3, single buffered']
    #allocation10 [shape = 's32[1]{0}', space=sflag, size = 0x4, scoped, tag = 'scoped memory for tpu_custom_call.1']
    #allocation11 [shape = 'u8[16384]{0}', space=vmem, size = 0x4000, scoped, tag = 'input window, operand 4, single buffered']
    #allocation12 [shape = 'u8[512]{0}', space=vmem, size = 0x400, scoped, tag = 'input window, operand 5, single buffered']
    #allocation13 [shape = 's32[1]{0}', space=sflag, size = 0x4, scoped, tag = 'scoped memory for tpu_custom_call.1']
    #allocation14 [shape = 'u8[8192]{0}', space=vmem, size = 0x2000, scoped, tag = 'output window, operand 0']
    %11 = vsyncpa [#allocation4], 0
    %s12 = scalar_lea.sflag [#allocation4], 1
    %13 = vsyncpa %s12, 0
    %14 = vsyncpa [#allocation7], 0
    %15 = vsyncpa [#allocation10], 0
    %16 = vsyncpa [#allocation13], 0
    %17 = vsyncpa [#allocation5], 0
    %s18 = scalar_lea.sflag [#allocation5], 1
    %19 = vsyncpa %s18, 0
    loop: start=0, step=1, limit=10
    $region2: #{tpu_custom_call.1} parent=1 // loop_pre_header
      _
    $region3: #{tpu_custom_call.1} parent=1 // loop_header
      %s21 = sphi 0, %s25
      %p22 = scmp.ge.s32.totalorder %s21, 10
      %s28 = sphi 0, %s47
      %s29 = sphi 0, %s43
      %s30 = sphi 0, %s39
      %s31 = sphi 0, %s28
      %s32 = sphi 0, %s29
      %s33 = sphi 0, %s30
      %s34 = sphi 0, %s31
      %s35 = sphi 0, %s32
      %s36 = sphi 0, %s33
      %s50 = sphi 0, %s52
      %s53 = sphi 0, %s50
      %s54 = sphi 0, %s53
      %s70 = sphi 0, %s54
      %s74 = sphi 0, %s74
      %s76 = sphi 0, %s74
      %s77 = sphi 0, %s76
      %s91 = sphi 0, %s77
      %s95 = sphi 0, %s95
      %s97 = sphi 0, %s95
      %s98 = sphi 0, %s97
      %s112 = sphi 0, %s98
      %s116 = sphi 0, %s116
      %s118 = sphi 0, %s116
      %s119 = sphi 0, %s118
      %s133 = sphi 0, %s119
      %s137 = sphi 0, %s137
      %s139 = sphi 0, %s137
      %s140 = sphi 0, %s139
      %s154 = sphi 0, %s140
      %s158 = sphi 0, %s158
      %s160 = sphi 0, %s158
      %s161 = sphi 0, %s160
      %s175 = sphi 0, %s161
      %s183 = sphi 0, %s185
      %s186 = sphi 0, %s183
      %s187 = sphi 0, %s186
      %s203 = sphi 0, %s187
    $region4: #{tpu_custom_call.1} parent=1 // loop_header_branch
      %24 = sbr.rel (%p22) target = $region8
    $region5: #{tpu_custom_call.1} parent=1 // loop_body
      %s26 = ssub.s32 %s21, 1
      %s27 = ssub.s32 %s21, 2
      %s37 = sadd.s32 1, %s30
      %p38 = scmp.ge.s32.totalorder %s37, 4
      %s39 = scalar_select %p38, 0, %s37
      %s40 = sadd.s32 1, %s29
      %s41 = scalar_select %p38, %s40, %s29
      %p42 = scmp.ge.s32.totalorder %s41, 1
      %s43 = scalar_select %p42, 0, %s41
      %s44 = sadd.s32 1, %s28
      %s45 = scalar_select %p42, %s44, %s28
      %p46 = scmp.ge.s32.totalorder %s45, 2
      %s47 = scalar_select %p46, 0, %s45
      %s48 = ssub.s32 %s28, %s47
      %p49 = scmp.eq.s32.totalorder %s48, 0
      %s51 = sadd.s32 %s50, 1
      %s52 = scalar_select %p49, %s50, %s51
      %p55 = pneg %p49
      %p56 = scmp.eq.s32.totalorder %s21, 7
      %p57 = por %p55, %p56
      %p58 = scmp.ne.s32.totalorder %s50, %s53
      %p59 = scmp.eq.s32.totalorder %s21, 0
      %p60 = por %p58, %p59
      %p61 = scmp.ne.s32.totalorder %s50, %s53
      %p62 = scmp.eq.s32.totalorder %s26, 7
      %p63 = por %p61, %p62
      %p64 = scmp.ne.s32.totalorder %s53, %s54
      %p65 = scmp.eq.s32.totalorder %s26, 0
      %p66 = por %p64, %p65
      %p67 = scmp.ne.s32.totalorder %s53, %s54
      %p68 = scmp.eq.s32.totalorder %s27, 7
      %p69 = por %p67, %p68
      %p71 = scmp.ne.s32.totalorder %s54, %s70
      %p72 = scmp.eq.s32.totalorder %s27, 0
      %p73 = por %p71, %p72
      %s75 = sadd.s32 %s74, 1
      %p78 = scmp.eq.s32.totalorder %s21, 7
      %p79 = scmp.ne.s32.totalorder %s74, %s76
      %p80 = scmp.eq.s32.totalorder %s21, 0
      %p81 = por %p79, %p80
      %p82 = scmp.ne.s32.totalorder %s74, %s76
      %p83 = scmp.eq.s32.totalorder %s26, 7
      %p84 = por %p82, %p83
      %p85 = scmp.ne.s32.totalorder %s76, %s77
      %p86 = scmp.eq.s32.totalorder %s26, 0
      %p87 = por %p85, %p86
      %p88 = scmp.ne.s32.totalorder %s76, %s77
      %p89 = scmp.eq.s32.totalorder %s27, 7
      %p90 = por %p88, %p89
      %p92 = scmp.ne.s32.totalorder %s77, %s91
      %p93 = scmp.eq.s32.totalorder %s27, 0
      %p94 = por %p92, %p93
      %s96 = sadd.s32 %s95, 1
      %p99 = scmp.eq.s32.totalorder %s21, 7
      %p100 = scmp.ne.s32.totalorder %s95, %s97
      %p101 = scmp.eq.s32.totalorder %s21, 0
      %p102 = por %p100, %p101
      %p103 = scmp.ne.s32.totalorder %s95, %s97
      %p104 = scmp.eq.s32.totalorder %s26, 7
      %p105 = por %p103, %p104
      %p106 = scmp.ne.s32.totalorder %s97, %s98
      %p107 = scmp.eq.s32.totalorder %s26, 0
      %p108 = por %p106, %p107
      %p109 = scmp.ne.s32.totalorder %s97, %s98
      %p110 = scmp.eq.s32.totalorder %s27, 7
      %p111 = por %p109, %p110
      %p113 = scmp.ne.s32.totalorder %s98, %s112
      %p114 = scmp.eq.s32.totalorder %s27, 0
      %p115 = por %p113, %p114
      %s117 = sadd.s32 %s116, 1
      %p120 = scmp.eq.s32.totalorder %s21, 7
      %p121 = scmp.ne.s32.totalorder %s116, %s118
      %p122 = scmp.eq.s32.totalorder %s21, 0
      %p123 = por %p121, %p122
      %p124 = scmp.ne.s32.totalorder %s116, %s118
      %p125 = scmp.eq.s32.totalorder %s26, 7
      %p126 = por %p124, %p125
      %p127 = scmp.ne.s32.totalorder %s118, %s119
      %p128 = scmp.eq.s32.totalorder %s26, 0
      %p129 = por %p127, %p128
      %p130 = scmp.ne.s32.totalorder %s118, %s119
      %p131 = scmp.eq.s32.totalorder %s27, 7
      %p132 = por %p130, %p131
      %p134 = scmp.ne.s32.totalorder %s119, %s133
      %p135 = scmp.eq.s32.totalorder %s27, 0
      %p136 = por %p134, %p135
      %s138 = sadd.s32 %s137, 1
      %p141 = scmp.eq.s32.totalorder %s21, 7
      %p142 = scmp.ne.s32.totalorder %s137, %s139
      %p143 = scmp.eq.s32.totalorder %s21, 0
      %p144 = por %p142, %p143
      %p145 = scmp.ne.s32.totalorder %s137, %s139
      %p146 = scmp.eq.s32.totalorder %s26, 7
      %p147 = por %p145, %p146
      %p148 = scmp.ne.s32.totalorder %s139, %s140
      %p149 = scmp.eq.s32.totalorder %s26, 0
      %p150 = por %p148, %p149
      %p151 = scmp.ne.s32.totalorder %s139, %s140
      %p152 = scmp.eq.s32.totalorder %s27, 7
      %p153 = por %p151, %p152
      %p155 = scmp.ne.s32.totalorder %s140, %s154
      %p156 = scmp.eq.s32.totalorder %s27, 0
      %p157 = por %p155, %p156
      %s159 = sadd.s32 %s158, 1
      %p162 = scmp.eq.s32.totalorder %s21, 7
      %p163 = scmp.ne.s32.totalorder %s158, %s160
      %p164 = scmp.eq.s32.totalorder %s21, 0
      %p165 = por %p163, %p164
      %p166 = scmp.ne.s32.totalorder %s158, %s160
      %p167 = scmp.eq.s32.totalorder %s26, 7
      %p168 = por %p166, %p167
      %p169 = scmp.ne.s32.totalorder %s160, %s161
      %p170 = scmp.eq.s32.totalorder %s26, 0
      %p171 = por %p169, %p170
      %p172 = scmp.ne.s32.totalorder %s160, %s161
      %p173 = scmp.eq.s32.totalorder %s27, 7
      %p174 = por %p172, %p173
      %p176 = scmp.ne.s32.totalorder %s161, %s175
      %p177 = scmp.eq.s32.totalorder %s27, 0
      %p178 = por %p176, %p177
      %s179 = ssub.s32 %s28, %s47
      %s180 = ssub.s32 %s29, %s43
      %s181 = sor.u32 %s179, %s180
      %p182 = scmp.eq.s32.totalorder %s181, 0
      %s184 = sadd.s32 %s183, 1
      %s185 = scalar_select %p182, %s183, %s184
      %p188 = pneg %p182
      %p189 = scmp.eq.s32.totalorder %s21, 7
      %p190 = por %p188, %p189
      %p191 = scmp.ne.s32.totalorder %s183, %s186
      %p192 = scmp.eq.s32.totalorder %s21, 0
      %p193 = por %p191, %p192
      %p194 = scmp.ne.s32.totalorder %s183, %s186
      %p195 = scmp.eq.s32.totalorder %s26, 7
      %p196 = por %p194, %p195
      %p197 = scmp.ne.s32.totalorder %s186, %s187
      %p198 = scmp.eq.s32.totalorder %s26, 0
      %p199 = por %p197, %p198
      %p200 = scmp.ne.s32.totalorder %s186, %s187
      %p201 = scmp.eq.s32.totalorder %s27, 7
      %p202 = por %p200, %p201
      %p204 = scmp.ne.s32.totalorder %s187, %s203
      %p205 = scmp.eq.s32.totalorder %s27, 0
      %p206 = por %p204, %p205
      %p207 = scmp.le.s32.totalorder 1, %s21
      %p208 = scmp.lt.s32.totalorder %s21, 9
      %p209 = pnand %p207, %p208
      %p210 = pneg %p209
      // Predicated region
      $region9: #{tpu_custom_call.1} parent=5 // pred_check
        _
      $region10: #{tpu_custom_call.1} parent=5 // pred_check_branch
        %212 = sbr.rel (%p209) target = $region12
      $region11: #{tpu_custom_call.1} parent=5 // pred_region
        %s213 = ssub.s32 %s21, 1
        // Predicated region
        $region13: #{tpu_custom_call.1} parent=11 // pred_check
          %p214 = pneg %p87
        $region14: #{tpu_custom_call.1} parent=11 // pred_check_branch
          %216 = sbr.rel (%p214) target = $region16
        $region15: #{tpu_custom_call.1} parent=11 // pred_region
          %s218 = ssub.s32 2048, 2048
          %219 = vsyncadd [#allocation7], %s218
          %s220 = sshll.u32 [#allocation6], 4
          %s221 = int_to_ptr.vmem [resolvable:$true] %s220
          %226 = dma.hbm_to_vmem [thread:$0]  %s1, 2048, %s221, [#allocation7], 128, 128, 8
        $region16: #{tpu_custom_call.1} parent=11 // pred_fallthru
          _
        // Predicated region
        $region17: #{tpu_custom_call.1} parent=11 // pred_check
          %p227 = pneg %p108
        $region18: #{tpu_custom_call.1} parent=11 // pred_check_branch
          %229 = sbr.rel (%p227) target = $region20
        $region19: #{tpu_custom_call.1} parent=11 // pred_region
          %s231 = ssub.s32 2048, 2048
          %232 = vsyncadd [#allocation7], %s231
          %s233 = sshll.u32 [#allocation8], 4
          %s234 = int_to_ptr.vmem [resolvable:$true] %s233
          %239 = dma.hbm_to_vmem [thread:$0]  %s2, 2048, %s234, [#allocation7], 128, 128, 8
        $region20: #{tpu_custom_call.1} parent=11 // pred_fallthru
          _
        // Predicated region
        $region21: #{tpu_custom_call.1} parent=11 // pred_check
          %p240 = pneg %p129
        $region22: #{tpu_custom_call.1} parent=11 // pred_check_branch
          %242 = sbr.rel (%p240) target = $region24
        $region23: #{tpu_custom_call.1} parent=11 // pred_region
          %s244 = ssub.s32 2048, 2048
          %245 = vsyncadd [#allocation10], %s244
          %s246 = sshll.u32 [#allocation9], 4
          %s247 = int_to_ptr.vmem [resolvable:$true] %s246
          %252 = dma.hbm_to_vmem [thread:$0]  %s3, 2048, %s247, [#allocation10], 128, 128, 8
        $region24: #{tpu_custom_call.1} parent=11 // pred_fallthru
          _
        // Predicated region
        $region25: #{tpu_custom_call.1} parent=11 // pred_check
          %p253 = pneg %p150
        $region26: #{tpu_custom_call.1} parent=11 // pred_check_branch
          %255 = sbr.rel (%p253) target = $region28
        $region27: #{tpu_custom_call.1} parent=11 // pred_region
          %s257 = ssub.s32 512, 512
          %258 = vsyncadd [#allocation10], %s257
          %s259 = sshll.u32 [#allocation11], 4
          %s260 = int_to_ptr.vmem [resolvable:$true] %s259
          %265 = dma.hbm_to_vmem [thread:$0]  %s4, 512, %s260, [#allocation10], 128, 128, 8
        $region28: #{tpu_custom_call.1} parent=11 // pred_fallthru
          _
        // Predicated region
        $region29: #{tpu_custom_call.1} parent=11 // pred_check
          %p266 = pneg %p171
        $region30: #{tpu_custom_call.1} parent=11 // pred_check_branch
          %268 = sbr.rel (%p266) target = $region32
        $region31: #{tpu_custom_call.1} parent=11 // pred_region
          %s270 = ssub.s32 16, 16
          %271 = vsyncadd [#allocation13], %s270
          %s273 = sshll.u32 [#allocation12], 4
          %s274 = int_to_ptr.vmem [resolvable:$true] %s273
          %276 = dma.hbm_to_vmem [thread:$0]  %s5, 16, %s274, [#allocation13]
        $region32: #{tpu_custom_call.1} parent=11 // pred_fallthru
          _
      $region12: #{tpu_custom_call.1} parent=5 // pred_fallthru
        _
      %p277 = scmp.lt.s32.totalorder %s21, 8
      // Predicated region
      $region33: #{tpu_custom_call.1} parent=5 // pred_check
        %p278 = pneg %p277
      $region34: #{tpu_custom_call.1} parent=5 // pred_check_branch
        %280 = sbr.rel (%p278) target = $region36
      $region35: #{tpu_custom_call.1} parent=5 // pred_region
        // Predicated region
        $region37: #{tpu_custom_call.1} parent=35 // pred_check
          %p281 = pneg %p60
        $region38: #{tpu_custom_call.1} parent=35 // pred_check_branch
          %283 = sbr.rel (%p281) target = $region40
        $region39: #{tpu_custom_call.1} parent=35 // pred_region
          %s284 = sand.u32 %s50, 1
          %s285 = scalar_lea.sflag [#allocation4], %s284
          %s286 = sand.u32 %s50, 1
          %s287 = smul.addr %s286, 8
          %s288 = scalar_lea.vmem [#allocation3], %s287
          %s290 = ssub.s32 128, 128
          %291 = vsyncadd %s285, %s290
          %s292 = smul.addr %s28, 128
          %s293 = scalar_lea.hbm %s0, %s292
          %s295 = sshll.u32 %s288, 4
          %s296 = int_to_ptr.vmem [resolvable:$true] %s295
          %298 = dma.hbm_to_vmem [thread:$0]  %s293, 128, %s296, %s285
        $region40: #{tpu_custom_call.1} parent=35 // pred_fallthru
          _
      $region36: #{tpu_custom_call.1} parent=5 // pred_fallthru
        _
      %p299 = scmp.le.s32.totalorder 1, %s21
      %p300 = scmp.lt.s32.totalorder %s21, 9
      %p301 = pnand %p299, %p300
      %p302 = pneg %p301
      // Predicated region
      $region41: #{tpu_custom_call.1} parent=5 // pred_check
        _
      $region42: #{tpu_custom_call.1} parent=5 // pred_check_branch
        %304 = sbr.rel (%p301) target = $region44
      $region43: #{tpu_custom_call.1} parent=5 // pred_region
        %s305 = ssub.s32 %s21, 1
        %s306 = sand.u32 %s53, 1
        %s307 = scalar_lea.sflag [#allocation4], %s306
        %s308 = sand.u32 %s53, 1
        %s309 = smul.addr %s308, 8
        %s310 = scalar_lea.vmem [#allocation3], %s309
        // Predicated region
        $region45: #{tpu_custom_call.1} parent=43 // pred_check
          %p311 = pneg %p66
        $region46: #{tpu_custom_call.1} parent=43 // pred_check_branch
          %313 = sbr.rel (%p311) target = $region48
        $region47: #{tpu_custom_call.1} parent=43 // pred_region
          %314 = dma.done %s307, 128
        $region48: #{tpu_custom_call.1} parent=43 // pred_fallthru
          _
        // Predicated region
        $region49: #{tpu_custom_call.1} parent=43 // pred_check
          %p315 = pneg %p87
        $region50: #{tpu_custom_call.1} parent=43 // pred_check_branch
          %317 = sbr.rel (%p315) target = $region52
        $region51: #{tpu_custom_call.1} parent=43 // pred_region
          %318 = dma.done [#allocation7], 2048
        $region52: #{tpu_custom_call.1} parent=43 // pred_fallthru
          _
        // Predicated region
        $region53: #{tpu_custom_call.1} parent=43 // pred_check
          %p319 = pneg %p108
        $region54: #{tpu_custom_call.1} parent=43 // pred_check_branch
          %321 = sbr.rel (%p319) target = $region56
        $region55: #{tpu_custom_call.1} parent=43 // pred_region
          %322 = dma.done [#allocation7], 2048
        $region56: #{tpu_custom_call.1} parent=43 // pred_fallthru
          _
        // Predicated region
        $region57: #{tpu_custom_call.1} parent=43 // pred_check
          %p323 = pneg %p129
        $region58: #{tpu_custom_call.1} parent=43 // pred_check_branch
          %325 = sbr.rel (%p323) target = $region60
        $region59: #{tpu_custom_call.1} parent=43 // pred_region
          %326 = dma.done [#allocation10], 2048
        $region60: #{tpu_custom_call.1} parent=43 // pred_fallthru
          _
        // Predicated region
        $region61: #{tpu_custom_call.1} parent=43 // pred_check
          %p327 = pneg %p150
        $region62: #{tpu_custom_call.1} parent=43 // pred_check_branch
          %329 = sbr.rel (%p327) target = $region64
        $region63: #{tpu_custom_call.1} parent=43 // pred_region
          %330 = dma.done [#allocation10], 512
        $region64: #{tpu_custom_call.1} parent=43 // pred_fallthru
          _
        // Predicated region
        $region65: #{tpu_custom_call.1} parent=43 // pred_check
          %p331 = pneg %p171
        $region66: #{tpu_custom_call.1} parent=43 // pred_check_branch
          %333 = sbr.rel (%p331) target = $region68
        $region67: #{tpu_custom_call.1} parent=43 // pred_region
          %334 = dma.done [#allocation13], 16
        $region68: #{tpu_custom_call.1} parent=43 // pred_fallthru
          _
        %s335 = sand.u32 %s53, 1
        %s336 = scalar_lea.sflag [#allocation4], %s335
        %s337 = sand.u32 %s53, 1
        %s338 = smul.addr %s337, 8
        %s339 = scalar_lea.vmem [#allocation3], %s338
        %p340 = pneg %p66
        %p341 = pneg %p63
        %p342 = pneg %p87
        %p343 = pneg %p84
        %p344 = pneg %p108
        %p345 = pneg %p105
        %p346 = pneg %p129
        %p347 = pneg %p126
        %p348 = pneg %p150
        %p349 = pneg %p147
        %p350 = pneg %p171
        %p351 = pneg %p168
        %p352 = pneg %p199
        %p353 = pneg %p196
        %s354 = sand.u32 %s186, 1
        %s355 = scalar_lea.sflag [#allocation5], %s354
        %s356 = sand.u32 %s186, 1
        %s357 = smul.addr %s356, 8
        %s358 = scalar_lea.vmem [#allocation14], %s357
        %v359 = vld [vmem:[%s310] sm:$0xff]
        %s360 = smul.u32 %s33, 32
        %s361 = scalar_lea.vmem [#allocation6], %s360
        %v362 = vld [vmem:[%s361] sm:$0xff]
        %v363 = vld [vmem:[%s361 + $0x8] sm:$0xff]
        %v364 = vld [vmem:[%s361 + $0x10] sm:$0xff]
        %v365 = vld [vmem:[%s361 + $0x18] sm:$0xff]
        %s366 = scalar_lea.vmem [#allocation8], %s360
        %v367 = vld [vmem:[%s366] sm:$0xff]
        %v368 = vld [vmem:[%s366 + $0x8] sm:$0xff]
        %v369 = vld [vmem:[%s366 + $0x10] sm:$0xff]
        %v370 = vld [vmem:[%s366 + $0x18] sm:$0xff]
        %s371 = scalar_lea.vmem [#allocation9], %s360
        %v372 = vld [vmem:[%s371] sm:$0xff]
        %v373 = vld [vmem:[%s371 + $0x8] sm:$0xff]
        %v374 = vld [vmem:[%s371 + $0x10] sm:$0xff]
        %v375 = vld [vmem:[%s371 + $0x18] sm:$0xff]
        %s376 = smul.u32 %s33, 8
        %s377 = scalar_lea.vmem [#allocation11], %s376
        %v378 = vld [vmem:[%s377] sm:$0xff]
        %vm379 = vcmask 261120
        %v381 = vsel %vm379, %v359, 0
        %383 = vmatprep.subr.mxu0 0.0
        %384 = vmatpush1.msra.mxu0 %v362
        %385 = vmatprep.subr.mxu0 0.0
        %386 = vmatpush1.msra.mxu0 %v363
        %387 = vmatprep.subr.mxu0 0.0
        %388 = vmatpush1.msra.mxu0 %v364
        %389 = vmatprep.subr.mxu0 0.0
        %390 = vmatpush1.msra.mxu0 %v365
        %391 = vmatprep.subr.mxu0 0.0
        %392 = vmatpush1.msra.mxu0 0.0
        %393 = vmatprep.subr.mxu0 0.0
        %394 = vmatpush1.msra.mxu0 0.0
        %395 = vmatprep.subr.mxu0 0.0
        %396 = vmatpush1.msra.mxu0 0.0
        %397 = vmatprep.subr.mxu0 0.0
        %398 = vmatpush1.msra.mxu0 0.0
        %399 = vmatprep.subr.mxu0 0.0
        %400 = vmatpush1.msra.mxu0 0.0
        %401 = vmatprep.subr.mxu0 0.0
        %402 = vmatpush1.msra.mxu0 0.0
        %403 = vmatprep.subr.mxu0 0.0
        %404 = vmatpush1.msra.mxu0 0.0
        %405 = vmatprep.subr.mxu0 0.0
        %406 = vmatpush1.msra.mxu0 0.0
        %407 = vmatprep.subr.mxu0 0.0
        %408 = vmatpush1.msra.mxu0 0.0
        %409 = vmatprep.subr.mxu0 0.0
        %410 = vmatpush1.msra.mxu0 0.0
        %411 = vmatprep.subr.mxu0 0.0
        %412 = vmatpush1.msra.mxu0 0.0
        %413 = vmatprep.subr.mxu0 0.0
        %414 = vmatpush1.msra.mxu0 0.0
        %415 = vmatprep.subr.mxu0 0.0
        %416 = vmatpush1.msra.mxu0 0.0
        %417 = vmatprep.subr.mxu0 0.0
        %418 = vmatpush1.msra.mxu0 0.0
        %419 = vmatprep.subr.mxu0 0.0
        %420 = vmatpush1.msra.mxu0 0.0
        %421 = vmatprep.subr.mxu0 0.0
        %422 = vmatpush1.msra.mxu0 0.0
        %423 = vmatprep.subr.mxu0 0.0
        %424 = vmatpush1.msra.mxu0 0.0
        %425 = vmatprep.subr.mxu0 0.0
        %426 = vmatpush1.msra.mxu0 0.0
        %427 = vmatprep.subr.mxu0 0.0
        %428 = vmatpush1.msra.mxu0 0.0
        %429 = vmatprep.subr.mxu0 0.0
        %430 = vmatpush1.msra.mxu0 0.0
        %431 = vmatprep.subr.mxu0 0.0
        %432 = vmatpush1.msra.mxu0 0.0
        %433 = vmatprep.subr.mxu0 0.0
        %434 = vmatpush1.msra.mxu0 0.0
        %435 = vmatprep.subr.mxu0 0.0
        %436 = vmatpush1.msra.mxu0 0.0
        %437 = vmatprep.subr.mxu0 0.0
        %438 = vmatpush1.msra.mxu0 0.0
        %439 = vmatprep.subr.mxu0 0.0
        %440 = vmatpush1.msra.mxu0 0.0
        %441 = vmatprep.subr.mxu0 0.0
        %442 = vmatpush1.msra.mxu0 0.0
        %443 = vmatprep.subr.mxu0 0.0
        %444 = vmatpush1.msra.mxu0 0.0
        %445 = vmatprep.subr.mxu0 0.0
        %446 = vmatpush1.msra.mxu0 0.0
        %447 = vmatprep.mubr.f32.mxu0 0.0
        %448 = vmatmul.mubr.f32.gmra.mrb[0].mxu0 %v381
        %v449 = vpop.f32.mrb[0].mxu0
        %v450 = vadd.f32 0.0, %v449
        %v451 = vpop.f32.mrb[0].mxu0
        %452 = vdwg.mxu0
        %453 = vmatprep.subr.mxu0 0.0
        %454 = vmatpush1.msra.mxu0 %v367
        %455 = vmatprep.subr.mxu0 0.0
        %456 = vmatpush1.msra.mxu0 %v368
        %457 = vmatprep.subr.mxu0 0.0
        %458 = vmatpush1.msra.mxu0 %v369
        %459 = vmatprep.subr.mxu0 0.0
        %460 = vmatpush1.msra.mxu0 %v370
        %461 = vmatprep.subr.mxu0 0.0
        %462 = vmatpush1.msra.mxu0 0.0
        %463 = vmatprep.subr.mxu0 0.0
        %464 = vmatpush1.msra.mxu0 0.0
        %465 = vmatprep.subr.mxu0 0.0
        %466 = vmatpush1.msra.mxu0 0.0
        %467 = vmatprep.subr.mxu0 0.0
        %468 = vmatpush1.msra.mxu0 0.0
        %469 = vmatprep.subr.mxu0 0.0
        %470 = vmatpush1.msra.mxu0 0.0
        %471 = vmatprep.subr.mxu0 0.0
        %472 = vmatpush1.msra.mxu0 0.0
        %473 = vmatprep.subr.mxu0 0.0
        %474 = vmatpush1.msra.mxu0 0.0
        %475 = vmatprep.subr.mxu0 0.0
        %476 = vmatpush1.msra.mxu0 0.0
        %477 = vmatprep.subr.mxu0 0.0
        %478 = vmatpush1.msra.mxu0 0.0
        %479 = vmatprep.subr.mxu0 0.0
        %480 = vmatpush1.msra.mxu0 0.0
        %481 = vmatprep.subr.mxu0 0.0
        %482 = vmatpush1.msra.mxu0 0.0
        %483 = vmatprep.subr.mxu0 0.0
        %484 = vmatpush1.msra.mxu0 0.0
        %485 = vmatprep.subr.mxu0 0.0
        %486 = vmatpush1.msra.mxu0 0.0
        %487 = vmatprep.subr.mxu0 0.0
        %488 = vmatpush1.msra.mxu0 0.0
        %489 = vmatprep.subr.mxu0 0.0
        %490 = vmatpush1.msra.mxu0 0.0
        %491 = vmatprep.subr.mxu0 0.0
        %492 = vmatpush1.msra.mxu0 0.0
        %493 = vmatprep.subr.mxu0 0.0
        %494 = vmatpush1.msra.mxu0 0.0
        %495 = vmatprep.subr.mxu0 0.0
        %496 = vmatpush1.msra.mxu0 0.0
        %497 = vmatprep.subr.mxu0 0.0
        %498 = vmatpush1.msra.mxu0 0.0
        %499 = vmatprep.subr.mxu0 0.0
        %500 = vmatpush1.msra.mxu0 0.0
        %501 = vmatprep.subr.mxu0 0.0
        %502 = vmatpush1.msra.mxu0 0.0
        %503 = vmatprep.subr.mxu0 0.0
        %504 = vmatpush1.msra.mxu0 0.0
        %505 = vmatprep.subr.mxu0 0.0
        %506 = vmatpush1.msra.mxu0 0.0
        %507 = vmatprep.subr.mxu0 0.0
        %508 = vmatpush1.msra.mxu0 0.0
        %509 = vmatprep.subr.mxu0 0.0
        %510 = vmatpush1.msra.mxu0 0.0
        %511 = vmatprep.subr.mxu0 0.0
        %512 = vmatpush1.msra.mxu0 0.0
        %513 = vmatprep.subr.mxu0 0.0
        %514 = vmatpush1.msra.mxu0 0.0
        %515 = vmatprep.subr.mxu0 0.0
        %516 = vmatpush1.msra.mxu0 0.0
        %517 = vmatprep.mubr.f32.mxu0 0.0
        %518 = vmatmul.mubr.f32.gmra.mrb[0].mxu0 %v381
        %v519 = vpop.f32.mrb[0].mxu0
        %v520 = vadd.f32 0.0, %v519
        %v521 = vpop.f32.mrb[0].mxu0
        %522 = vdwg.mxu0
        %523 = vmatprep.subr.mxu0 0.0
        %524 = vmatpush1.msra.mxu0 %v372
        %525 = vmatprep.subr.mxu0 0.0
        %526 = vmatpush1.msra.mxu0 %v373
        %527 = vmatprep.subr.mxu0 0.0
        %528 = vmatpush1.msra.mxu0 %v374
        %529 = vmatprep.subr.mxu0 0.0
        %530 = vmatpush1.msra.mxu0 %v375
        %531 = vmatprep.subr.mxu0 0.0
        %532 = vmatpush1.msra.mxu0 0.0
        %533 = vmatprep.subr.mxu0 0.0
        %534 = vmatpush1.msra.mxu0 0.0
        %535 = vmatprep.subr.mxu0 0.0
        %536 = vmatpush1.msra.mxu0 0.0
        %537 = vmatprep.subr.mxu0 0.0
        %538 = vmatpush1.msra.mxu0 0.0
        %539 = vmatprep.subr.mxu0 0.0
        %540 = vmatpush1.msra.mxu0 0.0
        %541 = vmatprep.subr.mxu0 0.0
        %542 = vmatpush1.msra.mxu0 0.0
        %543 = vmatprep.subr.mxu0 0.0
        %544 = vmatpush1.msra.mxu0 0.0
        %545 = vmatprep.subr.mxu0 0.0
        %546 = vmatpush1.msra.mxu0 0.0
        %547 = vmatprep.subr.mxu0 0.0
        %548 = vmatpush1.msra.mxu0 0.0
        %549 = vmatprep.subr.mxu0 0.0
        %550 = vmatpush1.msra.mxu0 0.0
        %551 = vmatprep.subr.mxu0 0.0
        %552 = vmatpush1.msra.mxu0 0.0
        %553 = vmatprep.subr.mxu0 0.0
        %554 = vmatpush1.msra.mxu0 0.0
        %555 = vmatprep.subr.mxu0 0.0
        %556 = vmatpush1.msra.mxu0 0.0
        %557 = vmatprep.subr.mxu0 0.0
        %558 = vmatpush1.msra.mxu0 0.0
        %559 = vmatprep.subr.mxu0 0.0
        %560 = vmatpush1.msra.mxu0 0.0
        %561 = vmatprep.subr.mxu0 0.0
        %562 = vmatpush1.msra.mxu0 0.0
        %563 = vmatprep.subr.mxu0 0.0
        %564 = vmatpush1.msra.mxu0 0.0
        %565 = vmatprep.subr.mxu0 0.0
        %566 = vmatpush1.msra.mxu0 0.0
        %567 = vmatprep.subr.mxu0 0.0
        %568 = vmatpush1.msra.mxu0 0.0
        %569 = vmatprep.subr.mxu0 0.0
        %570 = vmatpush1.msra.mxu0 0.0
        %571 = vmatprep.subr.mxu0 0.0
        %572 = vmatpush1.msra.mxu0 0.0
        %573 = vmatprep.subr.mxu0 0.0
        %574 = vmatpush1.msra.mxu0 0.0
        %575 = vmatprep.subr.mxu0 0.0
        %576 = vmatpush1.msra.mxu0 0.0
        %577 = vmatprep.subr.mxu0 0.0
        %578 = vmatpush1.msra.mxu0 0.0
        %579 = vmatprep.subr.mxu0 0.0
        %580 = vmatpush1.msra.mxu0 0.0
        %581 = vmatprep.subr.mxu0 0.0
        %582 = vmatpush1.msra.mxu0 0.0
        %583 = vmatprep.subr.mxu0 0.0
        %584 = vmatpush1.msra.mxu0 0.0
        %585 = vmatprep.subr.mxu0 0.0
        %586 = vmatpush1.msra.mxu0 0.0
        %587 = vmatprep.mubr.f32.mxu0 0.0
        %588 = vmatmul.mubr.f32.gmra.mrb[0].mxu0 %v381
        %v589 = vpop.f32.mrb[0].mxu0
        %v590 = vadd.f32 0.0, %v589
        %v591 = vpop.f32.mrb[0].mxu0
        %592 = vdwg.mxu0
        %vm593 = vcmask 64512
        %v595 = vsel %vm593, %v450, 0
        %v598 = vsel %vm593, %v520, 0
        %600 = vmatprep.subr.mxu0 0.0
        %601 = vmatpush1.xpose.msra.mxu0 %v598
        %602 = vmatprep.subr.mxu0 0.0
        %603 = vmatpush1.xpose.msra.mxu0 0.0
        %604 = vmatprep.subr.mxu0 0.0
        %605 = vmatpush1.xpose.msra.mxu0 0.0
        %606 = vmatprep.subr.mxu0 0.0
        %607 = vmatpush1.xpose.msra.mxu0 0.0
        %608 = vmatprep.subr.mxu0 0.0
        %609 = vmatpush1.xpose.msra.mxu0 0.0
        %610 = vmatprep.subr.mxu0 0.0
        %611 = vmatpush1.xpose.msra.mxu0 0.0
        %612 = vmatprep.subr.mxu0 0.0
        %613 = vmatpush1.xpose.msra.mxu0 0.0
        %614 = vmatprep.subr.mxu0 0.0
        %615 = vmatpush1.xpose.msra.mxu0 0.0
        %616 = vmatprep.subr.mxu0 0.0
        %617 = vmatpush1.xpose.msra.mxu0 0.0
        %618 = vmatprep.subr.mxu0 0.0
        %619 = vmatpush1.xpose.msra.mxu0 0.0
        %620 = vmatprep.subr.mxu0 0.0
        %621 = vmatpush1.xpose.msra.mxu0 0.0
        %622 = vmatprep.subr.mxu0 0.0
        %623 = vmatpush1.xpose.msra.mxu0 0.0
        %624 = vmatprep.subr.mxu0 0.0
        %625 = vmatpush1.xpose.msra.mxu0 0.0
        %626 = vmatprep.subr.mxu0 0.0
        %627 = vmatpush1.xpose.msra.mxu0 0.0
        %628 = vmatprep.subr.mxu0 0.0
        %629 = vmatpush1.xpose.msra.mxu0 0.0
        %630 = vmatprep.subr.mxu0 0.0
        %631 = vmatpush1.xpose.msra.mxu0 0.0
        %632 = vmatprep.subr.mxu0 0.0
        %633 = vmatpush1.xpose.msra.mxu0 0.0
        %634 = vmatprep.subr.mxu0 0.0
        %635 = vmatpush1.xpose.msra.mxu0 0.0
        %636 = vmatprep.subr.mxu0 0.0
        %637 = vmatpush1.xpose.msra.mxu0 0.0
        %638 = vmatprep.subr.mxu0 0.0
        %639 = vmatpush1.xpose.msra.mxu0 0.0
        %640 = vmatprep.subr.mxu0 0.0
        %641 = vmatpush1.xpose.msra.mxu0 0.0
        %642 = vmatprep.subr.mxu0 0.0
        %643 = vmatpush1.xpose.msra.mxu0 0.0
        %644 = vmatprep.subr.mxu0 0.0
        %645 = vmatpush1.xpose.msra.mxu0 0.0
        %646 = vmatprep.subr.mxu0 0.0
        %647 = vmatpush1.xpose.msra.mxu0 0.0
        %648 = vmatprep.subr.mxu0 0.0
        %649 = vmatpush1.xpose.msra.mxu0 0.0
        %650 = vmatprep.subr.mxu0 0.0
        %651 = vmatpush1.xpose.msra.mxu0 0.0
        %652 = vmatprep.subr.mxu0 0.0
        %653 = vmatpush1.xpose.msra.mxu0 0.0
        %654 = vmatprep.subr.mxu0 0.0
        %655 = vmatpush1.xpose.msra.mxu0 0.0
        %656 = vmatprep.subr.mxu0 0.0
        %657 = vmatpush1.xpose.msra.mxu0 0.0
        %658 = vmatprep.subr.mxu0 0.0
        %659 = vmatpush1.xpose.msra.mxu0 0.0
        %660 = vmatprep.subr.mxu0 0.0
        %661 = vmatpush1.xpose.msra.mxu0 0.0
        %662 = vmatprep.subr.mxu0 0.0
        %663 = vmatpush1.xpose.msra.mxu0 0.0
        %664 = vmatprep.mubr.f32.mxu0 0.0
        %665 = vmatmul.mubr.f32.gmra.mrb[0].mxu0 %v595
        %v666 = vpop.f32.mrb[0].mxu0
        %v667 = vadd.f32 0.0, %v666
        %v668 = vpop.f32.mrb[0].mxu0
        %669 = vdwg.mxu0
        %v670 = vsel %vm593, %v667, -inf
        %671 = vmax.xlane.f32.xlu0 %v670
        %v672 = vpop.xlane.xlu0 %671
        %v673 = vsub.f32 %v667, %v672
        %v674 = vmul.f32 %v673, 1.442695
        %v675 = vpow.pop %v674
        %v676 = vsel %vm593, %v675, 0.0
        %677 = vadd.xlane.f32.xlu0 %v676
        %v678 = vpop.xlane.xlu0 %677
        %v679 = vrcp.pop %v678
        %v680 = vmul.f32 %v675, %v679
        %v682 = vsel %vm593, %v680, 0
        %684 = vmatprep.subr.mxu0 0.0
        %685 = vmatpush1.msra.mxu0 %v590
        %686 = vmatprep.subr.mxu0 0.0
        %687 = vmatpush1.msra.mxu0 0.0
        %688 = vmatprep.subr.mxu0 0.0
        %689 = vmatpush1.msra.mxu0 0.0
        %690 = vmatprep.subr.mxu0 0.0
        %691 = vmatpush1.msra.mxu0 0.0
        %692 = vmatprep.subr.mxu0 0.0
        %693 = vmatpush1.msra.mxu0 0.0
        %694 = vmatprep.subr.mxu0 0.0
        %695 = vmatpush1.msra.mxu0 0.0
        %696 = vmatprep.subr.mxu0 0.0
        %697 = vmatpush1.msra.mxu0 0.0
        %698 = vmatprep.subr.mxu0 0.0
        %699 = vmatpush1.msra.mxu0 0.0
        %700 = vmatprep.subr.mxu0 0.0
        %701 = vmatpush1.msra.mxu0 0.0
        %702 = vmatprep.subr.mxu0 0.0
        %703 = vmatpush1.msra.mxu0 0.0
        %704 = vmatprep.subr.mxu0 0.0
        %705 = vmatpush1.msra.mxu0 0.0
        %706 = vmatprep.subr.mxu0 0.0
        %707 = vmatpush1.msra.mxu0 0.0
        %708 = vmatprep.subr.mxu0 0.0
        %709 = vmatpush1.msra.mxu0 0.0
        %710 = vmatprep.subr.mxu0 0.0
        %711 = vmatpush1.msra.mxu0 0.0
        %712 = vmatprep.subr.mxu0 0.0
        %713 = vmatpush1.msra.mxu0 0.0
        %714 = vmatprep.subr.mxu0 0.0
        %715 = vmatpush1.msra.mxu0 0.0
        %716 = vmatprep.subr.mxu0 0.0
        %717 = vmatpush1.msra.mxu0 0.0
        %718 = vmatprep.subr.mxu0 0.0
        %719 = vmatpush1.msra.mxu0 0.0
        %720 = vmatprep.subr.mxu0 0.0
        %721 = vmatpush1.msra.mxu0 0.0
        %722 = vmatprep.subr.mxu0 0.0
        %723 = vmatpush1.msra.mxu0 0.0
        %724 = vmatprep.subr.mxu0 0.0
        %725 = vmatpush1.msra.mxu0 0.0
        %726 = vmatprep.subr.mxu0 0.0
        %727 = vmatpush1.msra.mxu0 0.0
        %728 = vmatprep.subr.mxu0 0.0
        %729 = vmatpush1.msra.mxu0 0.0
        %730 = vmatprep.subr.mxu0 0.0
        %731 = vmatpush1.msra.mxu0 0.0
        %732 = vmatprep.subr.mxu0 0.0
        %733 = vmatpush1.msra.mxu0 0.0
        %734 = vmatprep.subr.mxu0 0.0
        %735 = vmatpush1.msra.mxu0 0.0
        %736 = vmatprep.subr.mxu0 0.0
        %737 = vmatpush1.msra.mxu0 0.0
        %738 = vmatprep.subr.mxu0 0.0
        %739 = vmatpush1.msra.mxu0 0.0
        %740 = vmatprep.subr.mxu0 0.0
        %741 = vmatpush1.msra.mxu0 0.0
        %742 = vmatprep.subr.mxu0 0.0
        %743 = vmatpush1.msra.mxu0 0.0
        %744 = vmatprep.subr.mxu0 0.0
        %745 = vmatpush1.msra.mxu0 0.0
        %746 = vmatprep.subr.mxu0 0.0
        %747 = vmatpush1.msra.mxu0 0.0
        %748 = vmatprep.mubr.f32.mxu0 0.0
        %749 = vmatmul.mubr.f32.gmra.mrb[0].mxu0 %v682
        %v750 = vpop.f32.mrb[0].mxu0
        %v751 = vadd.f32 0.0, %v750
        %v752 = vpop.f32.mrb[0].mxu0
        %753 = vdwg.mxu0
        %v755 = vsel %vm593, %v751, 0
        %757 = vmatprep.subr.mxu0 0.0
        %758 = vmatpush1.msra.mxu0 %v378
        %759 = vmatprep.subr.mxu0 0.0
        %760 = vmatpush1.msra.mxu0 0.0
        %761 = vmatprep.subr.mxu0 0.0
        %762 = vmatpush1.msra.mxu0 0.0
        %763 = vmatprep.subr.mxu0 0.0
        %764 = vmatpush1.msra.mxu0 0.0
        %765 = vmatprep.subr.mxu0 0.0
        %766 = vmatpush1.msra.mxu0 0.0
        %767 = vmatprep.subr.mxu0 0.0
        %768 = vmatpush1.msra.mxu0 0.0
        %769 = vmatprep.subr.mxu0 0.0
        %770 = vmatpush1.msra.mxu0 0.0
        %771 = vmatprep.subr.mxu0 0.0
        %772 = vmatpush1.msra.mxu0 0.0
        %773 = vmatprep.subr.mxu0 0.0
        %774 = vmatpush1.msra.mxu0 0.0
        %775 = vmatprep.subr.mxu0 0.0
        %776 = vmatpush1.msra.mxu0 0.0
        %777 = vmatprep.subr.mxu0 0.0
        %778 = vmatpush1.msra.mxu0 0.0
        %779 = vmatprep.subr.mxu0 0.0
        %780 = vmatpush1.msra.mxu0 0.0
        %781 = vmatprep.subr.mxu0 0.0
        %782 = vmatpush1.msra.mxu0 0.0
        %783 = vmatprep.subr.mxu0 0.0
        %784 = vmatpush1.msra.mxu0 0.0
        %785 = vmatprep.subr.mxu0 0.0
        %786 = vmatpush1.msra.mxu0 0.0
        %787 = vmatprep.subr.mxu0 0.0
        %788 = vmatpush1.msra.mxu0 0.0
        %789 = vmatprep.subr.mxu0 0.0
        %790 = vmatpush1.msra.mxu0 0.0
        %791 = vmatprep.subr.mxu0 0.0
        %792 = vmatpush1.msra.mxu0 0.0
        %793 = vmatprep.subr.mxu0 0.0
        %794 = vmatpush1.msra.mxu0 0.0
        %795 = vmatprep.subr.mxu0 0.0
        %796 = vmatpush1.msra.mxu0 0.0
        %797 = vmatprep.subr.mxu0 0.0
        %798 = vmatpush1.msra.mxu0 0.0
        %799 = vmatprep.subr.mxu0 0.0
        %800 = vmatpush1.msra.mxu0 0.0
        %801 = vmatprep.subr.mxu0 0.0
        %802 = vmatpush1.msra.mxu0 0.0
        %803 = vmatprep.subr.mxu0 0.0
        %804 = vmatpush1.msra.mxu0 0.0
        %805 = vmatprep.subr.mxu0 0.0
        %806 = vmatpush1.msra.mxu0 0.0
        %807 = vmatprep.subr.mxu0 0.0
        %808 = vmatpush1.msra.mxu0 0.0
        %809 = vmatprep.subr.mxu0 0.0
        %810 = vmatpush1.msra.mxu0 0.0
        %811 = vmatprep.subr.mxu0 0.0
        %812 = vmatpush1.msra.mxu0 0.0
        %813 = vmatprep.subr.mxu0 0.0
        %814 = vmatpush1.msra.mxu0 0.0
        %815 = vmatprep.subr.mxu0 0.0
        %816 = vmatpush1.msra.mxu0 0.0
        %817 = vmatprep.subr.mxu0 0.0
        %818 = vmatpush1.msra.mxu0 0.0
        %819 = vmatprep.subr.mxu0 0.0
        %820 = vmatpush1.msra.mxu0 0.0
        %821 = vmatprep.mubr.f32.mxu0 0.0
        %822 = vmatmul.mubr.f32.gmra.mrb[0].mxu0 %v755
        %v823 = vpop.f32.mrb[0].mxu0
        %v824 = vadd.f32 0.0, %v823
        %v825 = vpop.f32.mrb[0].mxu0
        %826 = vdwg.mxu0
        %p827 = scmp.eq.s32.totalorder %s33, 0
        // Predicated region
        $region69: #{tpu_custom_call.1} parent=43 // pred_check
          %p828 = pneg %p827
        $region70: #{tpu_custom_call.1} parent=43 // pred_check_branch
          %830 = sbr.rel (%p828) target = $region72
        $region71: #{tpu_custom_call.1} parent=43 // pred_region
          %831 = vst.msk [vmem:[#allocation2] sm:$0xff] %vm379, 0.0
        $region72: #{tpu_custom_call.1} parent=43 // pred_fallthru
          _
        %v832 = vld [vmem:[#allocation2] sm:$0xff]
        %v833 = vadd.f32 %v832, %v824
        %834 = vst.msk [vmem:[#allocation2] sm:$0xff] %vm379, %v833
        %p835 = scmp.eq.s32.totalorder %s33, 3
        // Predicated region
        $region73: #{tpu_custom_call.1} parent=43 // pred_check
          %p836 = pneg %p835
        $region74: #{tpu_custom_call.1} parent=43 // pred_check_branch
          %838 = sbr.rel (%p836) target = $region76
        $region75: #{tpu_custom_call.1} parent=43 // pred_region
          %v839 = vld [vmem:[#allocation2] sm:$0xff]
          %v840 = vld [vmem:[#allocation12] sm:$0x1]
          %v842 = vlaneseq
          %v843 = vshrl.u32 %v842, 7
          %v844 = vsub.s32 0, %v843
          %v845 = vrot.slane %v840, %v844
          %v847 = vadd.f32 %v839, %v845
          %848 = vst.msk [vmem:[%s358] sm:$0xff] %vm379, %v847
        $region76: #{tpu_custom_call.1} parent=43 // pred_fallthru
          _
        %s849 = sand.u32 %s186, 1
        %s850 = scalar_lea.sflag [#allocation5], %s849
        %s851 = sand.u32 %s186, 1
        %s852 = smul.addr %s851, 8
        %s853 = scalar_lea.vmem [#allocation14], %s852
        // Predicated region
        $region77: #{tpu_custom_call.1} parent=43 // pred_check
          %p854 = pneg %p196
        $region78: #{tpu_custom_call.1} parent=43 // pred_check_branch
          %856 = sbr.rel (%p854) target = $region80
        $region79: #{tpu_custom_call.1} parent=43 // pred_region
          %s858 = ssub.s32 128, 128
          %859 = vsyncadd %s850, %s858
          %s860 = sadd.s32 %s32, %s31
          %s861 = smul.addr %s860, 128
          %s862 = scalar_lea.hbm %s6, %s861
          %s864 = sshll.u32 %s853, 4
          %s865 = int_to_ptr.vmem [resolvable:$true] %s864
          %867 = dma.vmem_to_hbm [thread:$0]  %s865, 128, %s862, %s850
        $region80: #{tpu_custom_call.1} parent=43 // pred_fallthru
          _
      $region44: #{tpu_custom_call.1} parent=5 // pred_fallthru
        _
      %p868 = scmp.le.s32.totalorder 2, %s21
      // Predicated region
      $region81: #{tpu_custom_call.1} parent=5 // pred_check
        %p869 = pneg %p868
      $region82: #{tpu_custom_call.1} parent=5 // pred_check_branch
        %871 = sbr.rel (%p869) target = $region84
      $region83: #{tpu_custom_call.1} parent=5 // pred_region
        %s872 = ssub.s32 %s21, 2
        // Predicated region
        $region85: #{tpu_custom_call.1} parent=83 // pred_check
          %p873 = pneg %p202
        $region86: #{tpu_custom_call.1} parent=83 // pred_check_branch
          %875 = sbr.rel (%p873) target = $region88
        $region87: #{tpu_custom_call.1} parent=83 // pred_region
          %s876 = sand.u32 %s187, 1
          %s877 = scalar_lea.sflag [#allocation5], %s876
          %s878 = sand.u32 %s187, 1
          %s879 = smul.addr %s878, 8
          %s880 = scalar_lea.vmem [#allocation14], %s879
          %881 = dma.done %s877, 128
        $region88: #{tpu_custom_call.1} parent=83 // pred_fallthru
          _
      $region84: #{tpu_custom_call.1} parent=5 // pred_fallthru
        _
    $region6: #{tpu_custom_call.1} parent=1 // loop_footer
      %s25 = sadd.s32 1, %s21
    $region7: #{tpu_custom_call.1} parent=1 // loop_footer_branch
      %20 = sbr.rel target = $region3
    $region8: #{tpu_custom_call.1} parent=1 // loop_exit
      _
    %882 = vsyncpa [#allocation4], 1
    %s883 = scalar_lea.sflag [#allocation4], 1
    %884 = vsyncpa %s883, 1
    %885 = vsyncpa [#allocation7], 1
    %886 = vsyncpa [#allocation10], 1
    %887 = vsyncpa [#allocation13], 1
    %888 = vsyncpa [#allocation5], 1
    %s889 = scalar_lea.sflag [#allocation5], 1
    %890 = vsyncpa %s889, 1

// kernel: tpu_custom_call.1
$region0: #{tpu_custom_call.1}
  #allocation0 [shape = 'u32[]', space=smem, size = 0x4, offset = 0x4, fixed_abs, tag = 'smem constant byte address 0x4 - core index']
  #allocation1 [shape = 'u32[144,128]{1,0:T(1,128)}', space=vmem, size = 0x12000, scoped, tag = 'internal scratch']
  #allocation2 [shape = 'f32[8,32]{1,0:T(8,128)}', space=vmem, size = 0x1000, scoped, tag = 'scratch operand']
  %s0 = inlined_call_operand.hbm [shape: f32[2,8,32], index: 0, kind: input, shape index: {}]
  %s1 = inlined_call_operand.hbm [shape: f32[4,32,8], index: 1, kind: input, shape index: {}]
  %s2 = inlined_call_operand.hbm [shape: f32[4,32,8], index: 2, kind: input, shape index: {}]
  %s3 = inlined_call_operand.hbm [shape: f32[4,32,8], index: 3, kind: input, shape index: {}]
  %s4 = inlined_call_operand.hbm [shape: f32[4,8,32], index: 4, kind: input, shape index: {}]
  %s5 = inlined_call_operand.hbm [shape: f32[1,32], index: 5, kind: input, shape index: {}]
  %s6 = inlined_call_operand.hbm [shape: f32[2,8,32], index: 6, kind: output, shape index: {}]
  %s7 = sld [smem:[#allocation0]]
  $region89: #{tpu_custom_call.1} parent=0
    _
  %s9 = ssub.s32 1, %s7
  %s10 = scalar_select 0, %s9, %s7
  $region1: #{tpu_custom_call.1} parent=0
    #allocation3 [shape = 'u8[8192]{0}', space=vmem, size = 0x2000, scoped, tag = 'input window, operand 0']
    #allocation4 [shape = 's32[2]{0}', space=sflag, size = 0x8, scoped, tag = 'scoped memory for tpu_custom_call.1']
    #allocation5 [shape = 's32[2]{0}', space=sflag, size = 0x8, scoped, tag = 'scoped memory for tpu_custom_call.1']
    #allocation6 [shape = 'u8[65536]{0}', space=vmem, size = 0x10000, scoped, tag = 'input window, operand 1, single buffered']
    #allocation7 [shape = 's32[1]{0}', space=sflag, size = 0x4, scoped, tag = 'scoped memory for tpu_custom_call.1']
    #allocation8 [shape = 'u8[65536]{0}', space=vmem, size = 0x10000, scoped, tag = 'input window, operand 2, single buffered']
    #allocation9 [shape = 'u8[65536]{0}', space=vmem, size = 0x10000, scoped, tag = 'input window, operand 3, single buffered']
    #allocation10 [shape = 's32[1]{0}', space=sflag, size = 0x4, scoped, tag = 'scoped memory for tpu_custom_call.1']
    #allocation11 [shape = 'u8[16384]{0}', space=vmem, size = 0x4000, scoped, tag = 'input window, operand 4, single buffered']
    #allocation12 [shape = 'u8[512]{0}', space=vmem, size = 0x400, scoped, tag = 'input window, operand 5, single buffered']
    #allocation13 [shape = 's32[1]{0}', space=sflag, size = 0x4, scoped, tag = 'scoped memory for tpu_custom_call.1']
    #allocation14 [shape = 'u8[8192]{0}', space=vmem, size = 0x2000, scoped, tag = 'output window, operand 0']
    %11 = vsyncpa [#allocation4], 0
    %s12 = scalar_lea.sflag [#allocation4], 1
    %13 = vsyncpa %s12, 0
    %14 = vsyncpa [#allocation7], 0
    %15 = vsyncpa [#allocation10], 0
    %16 = vsyncpa [#allocation13], 0
    %17 = vsyncpa [#allocation5], 0
    %s18 = scalar_lea.sflag [#allocation5], 1
    %19 = vsyncpa %s18, 0
    loop: start=0, step=1, limit=10
    $region2: #{tpu_custom_call.1} parent=1 // loop_pre_header
      _
    $region3: #{tpu_custom_call.1} parent=1 // loop_header
      %s21 = sphi 0, %s25
      %p22 = scmp.ge.s32.totalorder %s21, 10
      %s28 = sphi 0, %s47
      %s29 = sphi 0, %s43
      %s30 = sphi 0, %s39
      %s31 = sphi 0, %s28
      %s32 = sphi 0, %s29
      %s33 = sphi 0, %s30
      %s34 = sphi 0, %s31
      %s35 = sphi 0, %s32
      %s36 = sphi 0, %s33
      %s50 = sphi 0, %s52
      %s53 = sphi 0, %s50
      %s54 = sphi 0, %s53
      %s70 = sphi 0, %s54
      %s74 = sphi 0, %s74
      %s76 = sphi 0, %s74
      %s77 = sphi 0, %s76
      %s91 = sphi 0, %s77
      %s95 = sphi 0, %s95
      %s97 = sphi 0, %s95
      %s98 = sphi 0, %s97
      %s112 = sphi 0, %s98
      %s116 = sphi 0, %s116
      %s118 = sphi 0, %s116
      %s119 = sphi 0, %s118
      %s133 = sphi 0, %s119
      %s137 = sphi 0, %s137
      %s139 = sphi 0, %s137
      %s140 = sphi 0, %s139
      %s154 = sphi 0, %s140
      %s158 = sphi 0, %s158
      %s160 = sphi 0, %s158
      %s161 = sphi 0, %s160
      %s175 = sphi 0, %s161
      %s183 = sphi 0, %s185
      %s186 = sphi 0, %s183
      %s187 = sphi 0, %s186
      %s203 = sphi 0, %s187
    $region4: #{tpu_custom_call.1} parent=1 // loop_header_branch
      %24 = sbr.rel (%p22) target = $region8
    $region5: #{tpu_custom_call.1} parent=1 // loop_body
      %s26 = ssub.s32 %s21, 1
      %s27 = ssub.s32 %s21, 2
      %s37 = sadd.s32 1, %s30
      %p38 = scmp.ge.s32.totalorder %s37, 4
      %s39 = scalar_select %p38, 0, %s37
      %s40 = sadd.s32 1, %s29
      %s41 = scalar_select %p38, %s40, %s29
      %p42 = scmp.ge.s32.totalorder %s41, 1
      %s43 = scalar_select %p42, 0, %s41
      %s44 = sadd.s32 1, %s28
      %s45 = scalar_select %p42, %s44, %s28
      %p46 = scmp.ge.s32.totalorder %s45, 2
      %s47 = scalar_select %p46, 0, %s45
      %s48 = ssub.s32 %s28, %s47
      %p49 = scmp.eq.s32.totalorder %s48, 0
      %s51 = sadd.s32 %s50, 1
      %s52 = scalar_select %p49, %s50, %s51
      %p55 = pneg %p49
      %p56 = scmp.eq.s32.totalorder %s21, 7
      %p57 = por %p55, %p56
      %p58 = scmp.ne.s32.totalorder %s50, %s53
      %p59 = scmp.eq.s32.totalorder %s21, 0
      %p60 = por %p58, %p59
      %p61 = scmp.ne.s32.totalorder %s50, %s53
      %p62 = scmp.eq.s32.totalorder %s26, 7
      %p63 = por %p61, %p62
      %p64 = scmp.ne.s32.totalorder %s53, %s54
      %p65 = scmp.eq.s32.totalorder %s26, 0
      %p66 = por %p64, %p65
      %p67 = scmp.ne.s32.totalorder %s53, %s54
      %p68 = scmp.eq.s32.totalorder %s27, 7
      %p69 = por %p67, %p68
      %p71 = scmp.ne.s32.totalorder %s54, %s70
      %p72 = scmp.eq.s32.totalorder %s27, 0
      %p73 = por %p71, %p72
      %s75 = sadd.s32 %s74, 1
      %p78 = scmp.eq.s32.totalorder %s21, 7
      %p79 = scmp.ne.s32.totalorder %s74, %s76
      %p80 = scmp.eq.s32.totalorder %s21, 0
      %p81 = por %p79, %p80
      %p82 = scmp.ne.s32.totalorder %s74, %s76
      %p83 = scmp.eq.s32.totalorder %s26, 7
      %p84 = por %p82, %p83
      %p85 = scmp.ne.s32.totalorder %s76, %s77
      %p86 = scmp.eq.s32.totalorder %s26, 0
      %p87 = por %p85, %p86
      %p88 = scmp.ne.s32.totalorder %s76, %s77
      %p89 = scmp.eq.s32.totalorder %s27, 7
      %p90 = por %p88, %p89
      %p92 = scmp.ne.s32.totalorder %s77, %s91
      %p93 = scmp.eq.s32.totalorder %s27, 0
      %p94 = por %p92, %p93
      %s96 = sadd.s32 %s95, 1
      %p99 = scmp.eq.s32.totalorder %s21, 7
      %p100 = scmp.ne.s32.totalorder %s95, %s97
      %p101 = scmp.eq.s32.totalorder %s21, 0
      %p102 = por %p100, %p101
      %p103 = scmp.ne.s32.totalorder %s95, %s97
      %p104 = scmp.eq.s32.totalorder %s26, 7
      %p105 = por %p103, %p104
      %p106 = scmp.ne.s32.totalorder %s97, %s98
      %p107 = scmp.eq.s32.totalorder %s26, 0
      %p108 = por %p106, %p107
      %p109 = scmp.ne.s32.totalorder %s97, %s98
      %p110 = scmp.eq.s32.totalorder %s27, 7
      %p111 = por %p109, %p110
      %p113 = scmp.ne.s32.totalorder %s98, %s112
      %p114 = scmp.eq.s32.totalorder %s27, 0
      %p115 = por %p113, %p114
      %s117 = sadd.s32 %s116, 1
      %p120 = scmp.eq.s32.totalorder %s21, 7
      %p121 = scmp.ne.s32.totalorder %s116, %s118
      %p122 = scmp.eq.s32.totalorder %s21, 0
      %p123 = por %p121, %p122
      %p124 = scmp.ne.s32.totalorder %s116, %s118
      %p125 = scmp.eq.s32.totalorder %s26, 7
      %p126 = por %p124, %p125
      %p127 = scmp.ne.s32.totalorder %s118, %s119
      %p128 = scmp.eq.s32.totalorder %s26, 0
      %p129 = por %p127, %p128
      %p130 = scmp.ne.s32.totalorder %s118, %s119
      %p131 = scmp.eq.s32.totalorder %s27, 7
      %p132 = por %p130, %p131
      %p134 = scmp.ne.s32.totalorder %s119, %s133
      %p135 = scmp.eq.s32.totalorder %s27, 0
      %p136 = por %p134, %p135
      %s138 = sadd.s32 %s137, 1
      %p141 = scmp.eq.s32.totalorder %s21, 7
      %p142 = scmp.ne.s32.totalorder %s137, %s139
      %p143 = scmp.eq.s32.totalorder %s21, 0
      %p144 = por %p142, %p143
      %p145 = scmp.ne.s32.totalorder %s137, %s139
      %p146 = scmp.eq.s32.totalorder %s26, 7
      %p147 = por %p145, %p146
      %p148 = scmp.ne.s32.totalorder %s139, %s140
      %p149 = scmp.eq.s32.totalorder %s26, 0
      %p150 = por %p148, %p149
      %p151 = scmp.ne.s32.totalorder %s139, %s140
      %p152 = scmp.eq.s32.totalorder %s27, 7
      %p153 = por %p151, %p152
      %p155 = scmp.ne.s32.totalorder %s140, %s154
      %p156 = scmp.eq.s32.totalorder %s27, 0
      %p157 = por %p155, %p156
      %s159 = sadd.s32 %s158, 1
      %p162 = scmp.eq.s32.totalorder %s21, 7
      %p163 = scmp.ne.s32.totalorder %s158, %s160
      %p164 = scmp.eq.s32.totalorder %s21, 0
      %p165 = por %p163, %p164
      %p166 = scmp.ne.s32.totalorder %s158, %s160
      %p167 = scmp.eq.s32.totalorder %s26, 7
      %p168 = por %p166, %p167
      %p169 = scmp.ne.s32.totalorder %s160, %s161
      %p170 = scmp.eq.s32.totalorder %s26, 0
      %p171 = por %p169, %p170
      %p172 = scmp.ne.s32.totalorder %s160, %s161
      %p173 = scmp.eq.s32.totalorder %s27, 7
      %p174 = por %p172, %p173
      %p176 = scmp.ne.s32.totalorder %s161, %s175
      %p177 = scmp.eq.s32.totalorder %s27, 0
      %p178 = por %p176, %p177
      %s179 = ssub.s32 %s28, %s47
      %s180 = ssub.s32 %s29, %s43
      %s181 = sor.u32 %s179, %s180
      %p182 = scmp.eq.s32.totalorder %s181, 0
      %s184 = sadd.s32 %s183, 1
      %s185 = scalar_select %p182, %s183, %s184
      %p188 = pneg %p182
      %p189 = scmp.eq.s32.totalorder %s21, 7
      %p190 = por %p188, %p189
      %p191 = scmp.ne.s32.totalorder %s183, %s186
      %p192 = scmp.eq.s32.totalorder %s21, 0
      %p193 = por %p191, %p192
      %p194 = scmp.ne.s32.totalorder %s183, %s186
      %p195 = scmp.eq.s32.totalorder %s26, 7
      %p196 = por %p194, %p195
      %p197 = scmp.ne.s32.totalorder %s186, %s187
      %p198 = scmp.eq.s32.totalorder %s26, 0
      %p199 = por %p197, %p198
      %p200 = scmp.ne.s32.totalorder %s186, %s187
      %p201 = scmp.eq.s32.totalorder %s27, 7
      %p202 = por %p200, %p201
      %p204 = scmp.ne.s32.totalorder %s187, %s203
      %p205 = scmp.eq.s32.totalorder %s27, 0
      %p206 = por %p204, %p205
      %p207 = scmp.le.s32.totalorder 1, %s21
      %p208 = scmp.lt.s32.totalorder %s21, 9
      %p209 = pnand %p207, %p208
      %p210 = pneg %p209
      // Predicated region
      $region9: #{tpu_custom_call.1} parent=5 // pred_check
        _
      $region10: #{tpu_custom_call.1} parent=5 // pred_check_branch
        %212 = sbr.rel (%p209) target = $region12
      $region11: #{tpu_custom_call.1} parent=5 // pred_region
        %s213 = ssub.s32 %s21, 1
        // Predicated region
        $region13: #{tpu_custom_call.1} parent=11 // pred_check
          %p214 = pneg %p87
        $region14: #{tpu_custom_call.1} parent=11 // pred_check_branch
          %216 = sbr.rel (%p214) target = $region16
        $region15: #{tpu_custom_call.1} parent=11 // pred_region
          %s218 = ssub.s32 2048, 2048
          %219 = vsyncadd [#allocation7], %s218
          %s220 = sshll.u32 [#allocation6], 4
          %s221 = int_to_ptr.vmem [resolvable:$true] %s220
          %226 = dma.hbm_to_vmem [thread:$0]  %s1, 2048, %s221, [#allocation7], 128, 128, 8
        $region16: #{tpu_custom_call.1} parent=11 // pred_fallthru
          _
        // Predicated region
        $region17: #{tpu_custom_call.1} parent=11 // pred_check
          %p227 = pneg %p108
        $region18: #{tpu_custom_call.1} parent=11 // pred_check_branch
          %229 = sbr.rel (%p227) target = $region20
        $region19: #{tpu_custom_call.1} parent=11 // pred_region
          %s231 = ssub.s32 2048, 2048
          %232 = vsyncadd [#allocation7], %s231
          %s233 = sshll.u32 [#allocation8], 4
          %s234 = int_to_ptr.vmem [resolvable:$true] %s233
          %239 = dma.hbm_to_vmem [thread:$0]  %s2, 2048, %s234, [#allocation7], 128, 128, 8
        $region20: #{tpu_custom_call.1} parent=11 // pred_fallthru
          _
        // Predicated region
        $region21: #{tpu_custom_call.1} parent=11 // pred_check
          %p240 = pneg %p129
        $region22: #{tpu_custom_call.1} parent=11 // pred_check_branch
          %242 = sbr.rel (%p240) target = $region24
        $region23: #{tpu_custom_call.1} parent=11 // pred_region
          %s244 = ssub.s32 2048, 2048
          %245 = vsyncadd [#allocation10], %s244
          %s246 = sshll.u32 [#allocation9], 4
          %s247 = int_to_ptr.vmem [resolvable:$true] %s246
          %252 = dma.hbm_to_vmem [thread:$0]  %s3, 2048, %s247, [#allocation10], 128, 128, 8
        $region24: #{tpu_custom_call.1} parent=11 // pred_fallthru
          _
        // Predicated region
        $region25: #{tpu_custom_call.1} parent=11 // pred_check
          %p253 = pneg %p150
        $region26: #{tpu_custom_call.1} parent=11 // pred_check_branch
          %255 = sbr.rel (%p253) target = $region28
        $region27: #{tpu_custom_call.1} parent=11 // pred_region
          %s257 = ssub.s32 512, 512
          %258 = vsyncadd [#allocation10], %s257
          %s259 = sshll.u32 [#allocation11], 4
          %s260 = int_to_ptr.vmem [resolvable:$true] %s259
          %265 = dma.hbm_to_vmem [thread:$0]  %s4, 512, %s260, [#allocation10], 128, 128, 8
        $region28: #{tpu_custom_call.1} parent=11 // pred_fallthru
          _
        // Predicated region
        $region29: #{tpu_custom_call.1} parent=11 // pred_check
          %p266 = pneg %p171
        $region30: #{tpu_custom_call.1} parent=11 // pred_check_branch
          %268 = sbr.rel (%p266) target = $region32
        $region31: #{tpu_custom_call.1} parent=11 // pred_region
          %s270 = ssub.s32 16, 16
          %271 = vsyncadd [#allocation13], %s270
          %s273 = sshll.u32 [#allocation12], 4
          %s274 = int_to_ptr.vmem [resolvable:$true] %s273
          %276 = dma.hbm_to_vmem [thread:$0]  %s5, 16, %s274, [#allocation13]
        $region32: #{tpu_custom_call.1} parent=11 // pred_fallthru
          _
      $region12: #{tpu_custom_call.1} parent=5 // pred_fallthru
        _
      %p277 = scmp.lt.s32.totalorder %s21, 8
      // Predicated region
      $region33: #{tpu_custom_call.1} parent=5 // pred_check
        %p278 = pneg %p277
      $region34: #{tpu_custom_call.1} parent=5 // pred_check_branch
        %280 = sbr.rel (%p278) target = $region36
      $region35: #{tpu_custom_call.1} parent=5 // pred_region
        // Predicated region
        $region37: #{tpu_custom_call.1} parent=35 // pred_check
          %p281 = pneg %p60
        $region38: #{tpu_custom_call.1} parent=35 // pred_check_branch
          %283 = sbr.rel (%p281) target = $region40
        $region39: #{tpu_custom_call.1} parent=35 // pred_region
          %s284 = sand.u32 %s50, 1
          %s285 = scalar_lea.sflag [#allocation4], %s284
          %s286 = sand.u32 %s50, 1
          %s287 = smul.addr %s286, 8
          %s288 = scalar_lea.vmem [#allocation3], %s287
          %s290 = ssub.s32 128, 128
          %291 = vsyncadd %s285, %s290
          %s292 = smul.addr %s28, 128
          %s293 = scalar_lea.hbm %s0, %s292
          %s295 = sshll.u32 %s288, 4
          %s296 = int_to_ptr.vmem [resolvable:$true] %s295
          %298 = dma.hbm_to_vmem [thread:$0]  %s293, 128, %s296, %s285
        $region40: #{tpu_custom_call.1} parent=35 // pred_fallthru
          _
      $region36: #{tpu_custom_call.1} parent=5 // pred_fallthru
        _
      %p299 = scmp.le.s32.totalorder 1, %s21
      %p300 = scmp.lt.s32.totalorder %s21, 9
      %p301 = pnand %p299, %p300
      %p302 = pneg %p301
      // Predicated region
      $region41: #{tpu_custom_call.1} parent=5 // pred_check
        _
      $region42: #{tpu_custom_call.1} parent=5 // pred_check_branch
        %304 = sbr.rel (%p301) target = $region44
      $region43: #{tpu_custom_call.1} parent=5 // pred_region
        %s305 = ssub.s32 %s21, 1
        %s306 = sand.u32 %s53, 1
        %s307 = scalar_lea.sflag [#allocation4], %s306
        %s308 = sand.u32 %s53, 1
        %s309 = smul.addr %s308, 8
        %s310 = scalar_lea.vmem [#allocation3], %s309
        // Predicated region
        $region45: #{tpu_custom_call.1} parent=43 // pred_check
          %p311 = pneg %p66
        $region46: #{tpu_custom_call.1} parent=43 // pred_check_branch
          %313 = sbr.rel (%p311) target = $region48
        $region47: #{tpu_custom_call.1} parent=43 // pred_region
          %314 = dma.done %s307, 128
        $region48: #{tpu_custom_call.1} parent=43 // pred_fallthru
          _
        // Predicated region
        $region49: #{tpu_custom_call.1} parent=43 // pred_check
          %p315 = pneg %p87
        $region50: #{tpu_custom_call.1} parent=43 // pred_check_branch
          %317 = sbr.rel (%p315) target = $region52
        $region51: #{tpu_custom_call.1} parent=43 // pred_region
          %318 = dma.done [#allocation7], 2048
        $region52: #{tpu_custom_call.1} parent=43 // pred_fallthru
          _
        // Predicated region
        $region53: #{tpu_custom_call.1} parent=43 // pred_check
          %p319 = pneg %p108
        $region54: #{tpu_custom_call.1} parent=43 // pred_check_branch
          %321 = sbr.rel (%p319) target = $region56
        $region55: #{tpu_custom_call.1} parent=43 // pred_region
          %322 = dma.done [#allocation7], 2048
        $region56: #{tpu_custom_call.1} parent=43 // pred_fallthru
          _
        // Predicated region
        $region57: #{tpu_custom_call.1} parent=43 // pred_check
          %p323 = pneg %p129
        $region58: #{tpu_custom_call.1} parent=43 // pred_check_branch
          %325 = sbr.rel (%p323) target = $region60
        $region59: #{tpu_custom_call.1} parent=43 // pred_region
          %326 = dma.done [#allocation10], 2048
        $region60: #{tpu_custom_call.1} parent=43 // pred_fallthru
          _
        // Predicated region
        $region61: #{tpu_custom_call.1} parent=43 // pred_check
          %p327 = pneg %p150
        $region62: #{tpu_custom_call.1} parent=43 // pred_check_branch
          %329 = sbr.rel (%p327) target = $region64
        $region63: #{tpu_custom_call.1} parent=43 // pred_region
          %330 = dma.done [#allocation10], 512
        $region64: #{tpu_custom_call.1} parent=43 // pred_fallthru
          _
        // Predicated region
        $region65: #{tpu_custom_call.1} parent=43 // pred_check
          %p331 = pneg %p171
        $region66: #{tpu_custom_call.1} parent=43 // pred_check_branch
          %333 = sbr.rel (%p331) target = $region68
        $region67: #{tpu_custom_call.1} parent=43 // pred_region
          %334 = dma.done [#allocation13], 16
        $region68: #{tpu_custom_call.1} parent=43 // pred_fallthru
          _
        %s335 = sand.u32 %s53, 1
        %s336 = scalar_lea.sflag [#allocation4], %s335
        %s337 = sand.u32 %s53, 1
        %s338 = smul.addr %s337, 8
        %s339 = scalar_lea.vmem [#allocation3], %s338
        %p340 = pneg %p66
        %p341 = pneg %p63
        %p342 = pneg %p87
        %p343 = pneg %p84
        %p344 = pneg %p108
        %p345 = pneg %p105
        %p346 = pneg %p129
        %p347 = pneg %p126
        %p348 = pneg %p150
        %p349 = pneg %p147
        %p350 = pneg %p171
        %p351 = pneg %p168
        %p352 = pneg %p199
        %p353 = pneg %p196
        %s354 = sand.u32 %s186, 1
        %s355 = scalar_lea.sflag [#allocation5], %s354
        %s356 = sand.u32 %s186, 1
        %s357 = smul.addr %s356, 8
        %s358 = scalar_lea.vmem [#allocation14], %s357
        %v359 = vld [vmem:[%s310] sm:$0xff]
        %s360 = smul.u32 %s33, 32
        %s361 = scalar_lea.vmem [#allocation6], %s360
        %v362 = vld [vmem:[%s361] sm:$0xff]
        %v363 = vld [vmem:[%s361 + $0x8] sm:$0xff]
        %v364 = vld [vmem:[%s361 + $0x10] sm:$0xff]
        %v365 = vld [vmem:[%s361 + $0x18] sm:$0xff]
        %s366 = scalar_lea.vmem [#allocation8], %s360
        %v367 = vld [vmem:[%s366] sm:$0xff]
        %v368 = vld [vmem:[%s366 + $0x8] sm:$0xff]
        %v369 = vld [vmem:[%s366 + $0x10] sm:$0xff]
        %v370 = vld [vmem:[%s366 + $0x18] sm:$0xff]
        %s371 = scalar_lea.vmem [#allocation9], %s360
        %v372 = vld [vmem:[%s371] sm:$0xff]
        %v373 = vld [vmem:[%s371 + $0x8] sm:$0xff]
        %v374 = vld [vmem:[%s371 + $0x10] sm:$0xff]
        %v375 = vld [vmem:[%s371 + $0x18] sm:$0xff]
        %s376 = smul.u32 %s33, 8
        %s377 = scalar_lea.vmem [#allocation11], %s376
        %v378 = vld [vmem:[%s377] sm:$0xff]
        %vm379 = vcmask 261120
        %v381 = vsel %vm379, %v359, 0
        %383 = vmatprep.subr.mxu0 0.0
        %384 = vmatpush1.msra.mxu0 %v362
        %385 = vmatprep.subr.mxu0 0.0
        %386 = vmatpush1.msra.mxu0 %v363
        %387 = vmatprep.subr.mxu0 0.0
        %388 = vmatpush1.msra.mxu0 %v364
        %389 = vmatprep.subr.mxu0 0.0
        %390 = vmatpush1.msra.mxu0 %v365
        %391 = vmatprep.subr.mxu0 0.0
        %392 = vmatpush1.msra.mxu0 0.0
        %393 = vmatprep.subr.mxu0 0.0
        %394 = vmatpush1.msra.mxu0 0.0
        %395 = vmatprep.subr.mxu0 0.0
        %396 = vmatpush1.msra.mxu0 0.0
        %397 = vmatprep.subr.mxu0 0.0
        %398 = vmatpush1.msra.mxu0 0.0
        %399 = vmatprep.subr.mxu0 0.0
        %400 = vmatpush1.msra.mxu0 0.0
        %401 = vmatprep.subr.mxu0 0.0
        %402 = vmatpush1.msra.mxu0 0.0
        %403 = vmatprep.subr.mxu0 0.0
        %404 = vmatpush1.msra.mxu0 0.0
        %405 = vmatprep.subr.mxu0 0.0
        %406 = vmatpush1.msra.mxu0 0.0
        %407 = vmatprep.subr.mxu0 0.0
        %408 = vmatpush1.msra.mxu0 0.0
        %409 = vmatprep.subr.mxu0 0.0
        %410 = vmatpush1.msra.mxu0 0.0
        %411 = vmatprep.subr.mxu0 0.0
        %412 = vmatpush1.msra.mxu0 0.0
        %413 = vmatprep.subr.mxu0 0.0
        %414 = vmatpush1.msra.mxu0 0.0
        %415 = vmatprep.subr.mxu0 0.0
        %416 = vmatpush1.msra.mxu0 0.0
        %417 = vmatprep.subr.mxu0 0.0
        %418 = vmatpush1.msra.mxu0 0.0
        %419 = vmatprep.subr.mxu0 0.0
        %420 = vmatpush1.msra.mxu0 0.0
        %421 = vmatprep.subr.mxu0 0.0
        %422 = vmatpush1.msra.mxu0 0.0
        %423 = vmatprep.subr.mxu0 0.0
        %424 = vmatpush1.msra.mxu0 0.0
        %425 = vmatprep.subr.mxu0 0.0
        %426 = vmatpush1.msra.mxu0 0.0
        %427 = vmatprep.subr.mxu0 0.0
        %428 = vmatpush1.msra.mxu0 0.0
        %429 = vmatprep.subr.mxu0 0.0
        %430 = vmatpush1.msra.mxu0 0.0
        %431 = vmatprep.subr.mxu0 0.0
        %432 = vmatpush1.msra.mxu0 0.0
        %433 = vmatprep.subr.mxu0 0.0
        %434 = vmatpush1.msra.mxu0 0.0
        %435 = vmatprep.subr.mxu0 0.0
        %436 = vmatpush1.msra.mxu0 0.0
        %437 = vmatprep.subr.mxu0 0.0
        %438 = vmatpush1.msra.mxu0 0.0
        %439 = vmatprep.subr.mxu0 0.0
        %440 = vmatpush1.msra.mxu0 0.0
        %441 = vmatprep.subr.mxu0 0.0
        %442 = vmatpush1.msra.mxu0 0.0
        %443 = vmatprep.subr.mxu0 0.0
        %444 = vmatpush1.msra.mxu0 0.0
        %445 = vmatprep.subr.mxu0 0.0
        %446 = vmatpush1.msra.mxu0 0.0
        %447 = vmatprep.mubr.f32.mxu0 0.0
        %448 = vmatmul.mubr.f32.gmra.mrb[0].mxu0 %v381
        %v449 = vpop.f32.mrb[0].mxu0
        %v450 = vadd.f32 0.0, %v449
        %v451 = vpop.f32.mrb[0].mxu0
        %452 = vdwg.mxu0
        %453 = vmatprep.subr.mxu0 0.0
        %454 = vmatpush1.msra.mxu0 %v367
        %455 = vmatprep.subr.mxu0 0.0
        %456 = vmatpush1.msra.mxu0 %v368
        %457 = vmatprep.subr.mxu0 0.0
        %458 = vmatpush1.msra.mxu0 %v369
        %459 = vmatprep.subr.mxu0 0.0
        %460 = vmatpush1.msra.mxu0 %v370
        %461 = vmatprep.subr.mxu0 0.0
        %462 = vmatpush1.msra.mxu0 0.0
        %463 = vmatprep.subr.mxu0 0.0
        %464 = vmatpush1.msra.mxu0 0.0
        %465 = vmatprep.subr.mxu0 0.0
        %466 = vmatpush1.msra.mxu0 0.0
        %467 = vmatprep.subr.mxu0 0.0
        %468 = vmatpush1.msra.mxu0 0.0
        %469 = vmatprep.subr.mxu0 0.0
        %470 = vmatpush1.msra.mxu0 0.0
        %471 = vmatprep.subr.mxu0 0.0
        %472 = vmatpush1.msra.mxu0 0.0
        %473 = vmatprep.subr.mxu0 0.0
        %474 = vmatpush1.msra.mxu0 0.0
        %475 = vmatprep.subr.mxu0 0.0
        %476 = vmatpush1.msra.mxu0 0.0
        %477 = vmatprep.subr.mxu0 0.0
        %478 = vmatpush1.msra.mxu0 0.0
        %479 = vmatprep.subr.mxu0 0.0
        %480 = vmatpush1.msra.mxu0 0.0
        %481 = vmatprep.subr.mxu0 0.0
        %482 = vmatpush1.msra.mxu0 0.0
        %483 = vmatprep.subr.mxu0 0.0
        %484 = vmatpush1.msra.mxu0 0.0
        %485 = vmatprep.subr.mxu0 0.0
        %486 = vmatpush1.msra.mxu0 0.0
        %487 = vmatprep.subr.mxu0 0.0
        %488 = vmatpush1.msra.mxu0 0.0
        %489 = vmatprep.subr.mxu0 0.0
        %490 = vmatpush1.msra.mxu0 0.0
        %491 = vmatprep.subr.mxu0 0.0
        %492 = vmatpush1.msra.mxu0 0.0
        %493 = vmatprep.subr.mxu0 0.0
        %494 = vmatpush1.msra.mxu0 0.0
        %495 = vmatprep.subr.mxu0 0.0
        %496 = vmatpush1.msra.mxu0 0.0
        %497 = vmatprep.subr.mxu0 0.0
        %498 = vmatpush1.msra.mxu0 0.0
        %499 = vmatprep.subr.mxu0 0.0
        %500 = vmatpush1.msra.mxu0 0.0
        %501 = vmatprep.subr.mxu0 0.0
        %502 = vmatpush1.msra.mxu0 0.0
        %503 = vmatprep.subr.mxu0 0.0
        %504 = vmatpush1.msra.mxu0 0.0
        %505 = vmatprep.subr.mxu0 0.0
        %506 = vmatpush1.msra.mxu0 0.0
        %507 = vmatprep.subr.mxu0 0.0
        %508 = vmatpush1.msra.mxu0 0.0
        %509 = vmatprep.subr.mxu0 0.0
        %510 = vmatpush1.msra.mxu0 0.0
        %511 = vmatprep.subr.mxu0 0.0
        %512 = vmatpush1.msra.mxu0 0.0
        %513 = vmatprep.subr.mxu0 0.0
        %514 = vmatpush1.msra.mxu0 0.0
        %515 = vmatprep.subr.mxu0 0.0
        %516 = vmatpush1.msra.mxu0 0.0
        %517 = vmatprep.mubr.f32.mxu0 0.0
        %518 = vmatmul.mubr.f32.gmra.mrb[0].mxu0 %v381
        %v519 = vpop.f32.mrb[0].mxu0
        %v520 = vadd.f32 0.0, %v519
        %v521 = vpop.f32.mrb[0].mxu0
        %522 = vdwg.mxu0
        %523 = vmatprep.subr.mxu0 0.0
        %524 = vmatpush1.msra.mxu0 %v372
        %525 = vmatprep.subr.mxu0 0.0
        %526 = vmatpush1.msra.mxu0 %v373
        %527 = vmatprep.subr.mxu0 0.0
        %528 = vmatpush1.msra.mxu0 %v374
        %529 = vmatprep.subr.mxu0 0.0
        %530 = vmatpush1.msra.mxu0 %v375
        %531 = vmatprep.subr.mxu0 0.0
        %532 = vmatpush1.msra.mxu0 0.0
        %533 = vmatprep.subr.mxu0 0.0
        %534 = vmatpush1.msra.mxu0 0.0
        %535 = vmatprep.subr.mxu0 0.0
        %536 = vmatpush1.msra.mxu0 0.0
        %537 = vmatprep.subr.mxu0 0.0
        %538 = vmatpush1.msra.mxu0 0.0
        %539 = vmatprep.subr.mxu0 0.0
        %540 = vmatpush1.msra.mxu0 0.0
        %541 = vmatprep.subr.mxu0 0.0
        %542 = vmatpush1.msra.mxu0 0.0
        %543 = vmatprep.subr.mxu0 0.0
        %544 = vmatpush1.msra.mxu0 0.0
        %545 = vmatprep.subr.mxu0 0.0
        %546 = vmatpush1.msra.mxu0 0.0
        %547 = vmatprep.subr.mxu0 0.0
        %548 = vmatpush1.msra.mxu0 0.0
        %549 = vmatprep.subr.mxu0 0.0
        %550 = vmatpush1.msra.mxu0 0.0
        %551 = vmatprep.subr.mxu0 0.0
        %552 = vmatpush1.msra.mxu0 0.0
        %553 = vmatprep.subr.mxu0 0.0
        %554 = vmatpush1.msra.mxu0 0.0
        %555 = vmatprep.subr.mxu0 0.0
        %556 = vmatpush1.msra.mxu0 0.0
        %557 = vmatprep.subr.mxu0 0.0
        %558 = vmatpush1.msra.mxu0 0.0
        %559 = vmatprep.subr.mxu0 0.0
        %560 = vmatpush1.msra.mxu0 0.0
        %561 = vmatprep.subr.mxu0 0.0
        %562 = vmatpush1.msra.mxu0 0.0
        %563 = vmatprep.subr.mxu0 0.0
        %564 = vmatpush1.msra.mxu0 0.0
        %565 = vmatprep.subr.mxu0 0.0
        %566 = vmatpush1.msra.mxu0 0.0
        %567 = vmatprep.subr.mxu0 0.0
        %568 = vmatpush1.msra.mxu0 0.0
        %569 = vmatprep.subr.mxu0 0.0
        %570 = vmatpush1.msra.mxu0 0.0
        %571 = vmatprep.subr.mxu0 0.0
        %572 = vmatpush1.msra.mxu0 0.0
        %573 = vmatprep.subr.mxu0 0.0
        %574 = vmatpush1.msra.mxu0 0.0
        %575 = vmatprep.subr.mxu0 0.0
        %576 = vmatpush1.msra.mxu0 0.0
        %577 = vmatprep.subr.mxu0 0.0
        %578 = vmatpush1.msra.mxu0 0.0
        %579 = vmatprep.subr.mxu0 0.0
        %580 = vmatpush1.msra.mxu0 0.0
        %581 = vmatprep.subr.mxu0 0.0
        %582 = vmatpush1.msra.mxu0 0.0
        %583 = vmatprep.subr.mxu0 0.0
        %584 = vmatpush1.msra.mxu0 0.0
        %585 = vmatprep.subr.mxu0 0.0
        %586 = vmatpush1.msra.mxu0 0.0
        %587 = vmatprep.mubr.f32.mxu0 0.0
        %588 = vmatmul.mubr.f32.gmra.mrb[0].mxu0 %v381
        %v589 = vpop.f32.mrb[0].mxu0
        %v590 = vadd.f32 0.0, %v589
        %v591 = vpop.f32.mrb[0].mxu0
        %592 = vdwg.mxu0
        %vm593 = vcmask 64512
        %v595 = vsel %vm593, %v450, 0
        %v598 = vsel %vm593, %v520, 0
        %600 = vmatprep.subr.mxu0 0.0
        %601 = vmatpush1.xpose.msra.mxu0 %v598
        %602 = vmatprep.subr.mxu0 0.0
        %603 = vmatpush1.xpose.msra.mxu0 0.0
        %604 = vmatprep.subr.mxu0 0.0
        %605 = vmatpush1.xpose.msra.mxu0 0.0
        %606 = vmatprep.subr.mxu0 0.0
        %607 = vmatpush1.xpose.msra.mxu0 0.0
        %608 = vmatprep.subr.mxu0 0.0
        %609 = vmatpush1.xpose.msra.mxu0 0.0
        %610 = vmatprep.subr.mxu0 0.0
        %611 = vmatpush1.xpose.msra.mxu0 0.0
        %612 = vmatprep.subr.mxu0 0.0
        %613 = vmatpush1.xpose.msra.mxu0 0.0
        %614 = vmatprep.subr.mxu0 0.0
        %615 = vmatpush1.xpose.msra.mxu0 0.0
        %616 = vmatprep.subr.mxu0 0.0
        %617 = vmatpush1.xpose.msra.mxu0 0.0
        %618 = vmatprep.subr.mxu0 0.0
        %619 = vmatpush1.xpose.msra.mxu0 0.0
        %620 = vmatprep.subr.mxu0 0.0
        %621 = vmatpush1.xpose.msra.mxu0 0.0
        %622 = vmatprep.subr.mxu0 0.0
        %623 = vmatpush1.xpose.msra.mxu0 0.0
        %624 = vmatprep.subr.mxu0 0.0
        %625 = vmatpush1.xpose.msra.mxu0 0.0
        %626 = vmatprep.subr.mxu0 0.0
        %627 = vmatpush1.xpose.msra.mxu0 0.0
        %628 = vmatprep.subr.mxu0 0.0
        %629 = vmatpush1.xpose.msra.mxu0 0.0
        %630 = vmatprep.subr.mxu0 0.0
        %631 = vmatpush1.xpose.msra.mxu0 0.0
        %632 = vmatprep.subr.mxu0 0.0
        %633 = vmatpush1.xpose.msra.mxu0 0.0
        %634 = vmatprep.subr.mxu0 0.0
        %635 = vmatpush1.xpose.msra.mxu0 0.0
        %636 = vmatprep.subr.mxu0 0.0
        %637 = vmatpush1.xpose.msra.mxu0 0.0
        %638 = vmatprep.subr.mxu0 0.0
        %639 = vmatpush1.xpose.msra.mxu0 0.0
        %640 = vmatprep.subr.mxu0 0.0
        %641 = vmatpush1.xpose.msra.mxu0 0.0
        %642 = vmatprep.subr.mxu0 0.0
        %643 = vmatpush1.xpose.msra.mxu0 0.0
        %644 = vmatprep.subr.mxu0 0.0
        %645 = vmatpush1.xpose.msra.mxu0 0.0
        %646 = vmatprep.subr.mxu0 0.0
        %647 = vmatpush1.xpose.msra.mxu0 0.0
        %648 = vmatprep.subr.mxu0 0.0
        %649 = vmatpush1.xpose.msra.mxu0 0.0
        %650 = vmatprep.subr.mxu0 0.0
        %651 = vmatpush1.xpose.msra.mxu0 0.0
        %652 = vmatprep.subr.mxu0 0.0
        %653 = vmatpush1.xpose.msra.mxu0 0.0
        %654 = vmatprep.subr.mxu0 0.0
        %655 = vmatpush1.xpose.msra.mxu0 0.0
        %656 = vmatprep.subr.mxu0 0.0
        %657 = vmatpush1.xpose.msra.mxu0 0.0
        %658 = vmatprep.subr.mxu0 0.0
        %659 = vmatpush1.xpose.msra.mxu0 0.0
        %660 = vmatprep.subr.mxu0 0.0
        %661 = vmatpush1.xpose.msra.mxu0 0.0
        %662 = vmatprep.subr.mxu0 0.0
        %663 = vmatpush1.xpose.msra.mxu0 0.0
        %664 = vmatprep.mubr.f32.mxu0 0.0
        %665 = vmatmul.mubr.f32.gmra.mrb[0].mxu0 %v595
        %v666 = vpop.f32.mrb[0].mxu0
        %v667 = vadd.f32 0.0, %v666
        %v668 = vpop.f32.mrb[0].mxu0
        %669 = vdwg.mxu0
        %v670 = vsel %vm593, %v667, -inf
        %671 = vmax.xlane.f32.xlu0 %v670
        %v672 = vpop.xlane.xlu0 %671
        %v673 = vsub.f32 %v667, %v672
        %v674 = vmul.f32 %v673, 1.442695
        %v675 = vpow.pop %v674
        %v676 = vsel %vm593, %v675, 0.0
        %677 = vadd.xlane.f32.xlu0 %v676
        %v678 = vpop.xlane.xlu0 %677
        %v679 = vrcp.pop %v678
        %v680 = vmul.f32 %v675, %v679
        %v682 = vsel %vm593, %v680, 0
        %684 = vmatprep.subr.mxu0 0.0
        %685 = vmatpush1.msra.mxu0 %v590
        %686 = vmatprep.subr.mxu0 0.0
        %687 = vmatpush1.msra.mxu0 0.0
        %688 = vmatprep.subr.mxu0 0.0
        %689 = vmatpush1.msra.mxu0 0.0
        %690 = vmatprep.subr.mxu0 0.0
        %691 = vmatpush1.msra.mxu0 0.0
        %692 = vmatprep.subr.mxu0 0.0
        %693 = vmatpush1.msra.mxu0 0.0
        %694 = vmatprep.subr.mxu0 0.0
        %695 = vmatpush1.msra.mxu0 0.0
        %696 = vmatprep.subr.mxu0 0.0
        %697 = vmatpush1.msra.mxu0 0.0
        %698 = vmatprep.subr.mxu0 0.0
        %699 = vmatpush1.msra.mxu0 0.0
        %700 = vmatprep.subr.mxu0 0.0
        %701 = vmatpush1.msra.mxu0 0.0
        %702 = vmatprep.subr.mxu0 0.0
        %703 = vmatpush1.msra.mxu0 0.0
        %704 = vmatprep.subr.mxu0 0.0
        %705 = vmatpush1.msra.mxu0 0.0
        %706 = vmatprep.subr.mxu0 0.0
        %707 = vmatpush1.msra.mxu0 0.0
        %708 = vmatprep.subr.mxu0 0.0
        %709 = vmatpush1.msra.mxu0 0.0
        %710 = vmatprep.subr.mxu0 0.0
        %711 = vmatpush1.msra.mxu0 0.0
        %712 = vmatprep.subr.mxu0 0.0
        %713 = vmatpush1.msra.mxu0 0.0
        %714 = vmatprep.subr.mxu0 0.0
        %715 = vmatpush1.msra.mxu0 0.0
        %716 = vmatprep.subr.mxu0 0.0
        %717 = vmatpush1.msra.mxu0 0.0
        %718 = vmatprep.subr.mxu0 0.0
        %719 = vmatpush1.msra.mxu0 0.0
        %720 = vmatprep.subr.mxu0 0.0
        %721 = vmatpush1.msra.mxu0 0.0
        %722 = vmatprep.subr.mxu0 0.0
        %723 = vmatpush1.msra.mxu0 0.0
        %724 = vmatprep.subr.mxu0 0.0
        %725 = vmatpush1.msra.mxu0 0.0
        %726 = vmatprep.subr.mxu0 0.0
        %727 = vmatpush1.msra.mxu0 0.0
        %728 = vmatprep.subr.mxu0 0.0
        %729 = vmatpush1.msra.mxu0 0.0
        %730 = vmatprep.subr.mxu0 0.0
        %731 = vmatpush1.msra.mxu0 0.0
        %732 = vmatprep.subr.mxu0 0.0
        %733 = vmatpush1.msra.mxu0 0.0
        %734 = vmatprep.subr.mxu0 0.0
        %735 = vmatpush1.msra.mxu0 0.0
        %736 = vmatprep.subr.mxu0 0.0
        %737 = vmatpush1.msra.mxu0 0.0
        %738 = vmatprep.subr.mxu0 0.0
        %739 = vmatpush1.msra.mxu0 0.0
        %740 = vmatprep.subr.mxu0 0.0
        %741 = vmatpush1.msra.mxu0 0.0
        %742 = vmatprep.subr.mxu0 0.0
        %743 = vmatpush1.msra.mxu0 0.0
        %744 = vmatprep.subr.mxu0 0.0
        %745 = vmatpush1.msra.mxu0 0.0
        %746 = vmatprep.subr.mxu0 0.0
        %747 = vmatpush1.msra.mxu0 0.0
        %748 = vmatprep.mubr.f32.mxu0 0.0
        %749 = vmatmul.mubr.f32.gmra.mrb[0].mxu0 %v682
        %v750 = vpop.f32.mrb[0].mxu0
        %v751 = vadd.f32 0.0, %v750
        %v752 = vpop.f32.mrb[0].mxu0
        %753 = vdwg.mxu0
        %v755 = vsel %vm593, %v751, 0
        %757 = vmatprep.subr.mxu0 0.0
        %758 = vmatpush1.msra.mxu0 %v378
        %759 = vmatprep.subr.mxu0 0.0
        %760 = vmatpush1.msra.mxu0 0.0
        %761 = vmatprep.subr.mxu0 0.0
        %762 = vmatpush1.msra.mxu0 0.0
        %763 = vmatprep.subr.mxu0 0.0
        %764 = vmatpush1.msra.mxu0 0.0
        %765 = vmatprep.subr.mxu0 0.0
        %766 = vmatpush1.msra.mxu0 0.0
        %767 = vmatprep.subr.mxu0 0.0
        %768 = vmatpush1.msra.mxu0 0.0
        %769 = vmatprep.subr.mxu0 0.0
        %770 = vmatpush1.msra.mxu0 0.0
        %771 = vmatprep.subr.mxu0 0.0
        %772 = vmatpush1.msra.mxu0 0.0
        %773 = vmatprep.subr.mxu0 0.0
        %774 = vmatpush1.msra.mxu0 0.0
        %775 = vmatprep.subr.mxu0 0.0
        %776 = vmatpush1.msra.mxu0 0.0
        %777 = vmatprep.subr.mxu0 0.0
        %778 = vmatpush1.msra.mxu0 0.0
        %779 = vmatprep.subr.mxu0 0.0
        %780 = vmatpush1.msra.mxu0 0.0
        %781 = vmatprep.subr.mxu0 0.0
        %782 = vmatpush1.msra.mxu0 0.0
        %783 = vmatprep.subr.mxu0 0.0
        %784 = vmatpush1.msra.mxu0 0.0
        %785 = vmatprep.subr.mxu0 0.0
        %786 = vmatpush1.msra.mxu0 0.0
        %787 = vmatprep.subr.mxu0 0.0
        %788 = vmatpush1.msra.mxu0 0.0
        %789 = vmatprep.subr.mxu0 0.0
        %790 = vmatpush1.msra.mxu0 0.0
        %791 = vmatprep.subr.mxu0 0.0
        %792 = vmatpush1.msra.mxu0 0.0
        %793 = vmatprep.subr.mxu0 0.0
        %794 = vmatpush1.msra.mxu0 0.0
        %795 = vmatprep.subr.mxu0 0.0
        %796 = vmatpush1.msra.mxu0 0.0
        %797 = vmatprep.subr.mxu0 0.0
        %798 = vmatpush1.msra.mxu0 0.0
        %799 = vmatprep.subr.mxu0 0.0
        %800 = vmatpush1.msra.mxu0 0.0
        %801 = vmatprep.subr.mxu0 0.0
        %802 = vmatpush1.msra.mxu0 0.0
        %803 = vmatprep.subr.mxu0 0.0
        %804 = vmatpush1.msra.mxu0 0.0
        %805 = vmatprep.subr.mxu0 0.0
        %806 = vmatpush1.msra.mxu0 0.0
        %807 = vmatprep.subr.mxu0 0.0
        %808 = vmatpush1.msra.mxu0 0.0
        %809 = vmatprep.subr.mxu0 0.0
        %810 = vmatpush1.msra.mxu0 0.0
        %811 = vmatprep.subr.mxu0 0.0
        %812 = vmatpush1.msra.mxu0 0.0
        %813 = vmatprep.subr.mxu0 0.0
        %814 = vmatpush1.msra.mxu0 0.0
        %815 = vmatprep.subr.mxu0 0.0
        %816 = vmatpush1.msra.mxu0 0.0
        %817 = vmatprep.subr.mxu0 0.0
        %818 = vmatpush1.msra.mxu0 0.0
        %819 = vmatprep.subr.mxu0 0.0
        %820 = vmatpush1.msra.mxu0 0.0
        %821 = vmatprep.mubr.f32.mxu0 0.0
        %822 = vmatmul.mubr.f32.gmra.mrb[0].mxu0 %v755
        %v823 = vpop.f32.mrb[0].mxu0
        %v824 = vadd.f32 0.0, %v823
        %v825 = vpop.f32.mrb[0].mxu0
        %826 = vdwg.mxu0
        %p827 = scmp.eq.s32.totalorder %s33, 0
        // Predicated region
        $region69: #{tpu_custom_call.1} parent=43 // pred_check
          %p828 = pneg %p827
        $region70: #{tpu_custom_call.1} parent=43 // pred_check_branch
          %830 = sbr.rel (%p828) target = $region72
        $region71: #{tpu_custom_call.1} parent=43 // pred_region
          %831 = vst.msk [vmem:[#allocation2] sm:$0xff] %vm379, 0.0
        $region72: #{tpu_custom_call.1} parent=43 // pred_fallthru
          _
        %v832 = vld [vmem:[#allocation2] sm:$0xff]
        %v833 = vadd.f32 %v832, %v824
        %834 = vst.msk [vmem:[#allocation2] sm:$0xff] %vm379, %v833
        %p835 = scmp.eq.s32.totalorder %s33, 3
        // Predicated region
        $region73: #{tpu_custom_call.1} parent=43 // pred_check
          %p836 = pneg %p835
        $region74: #{tpu_custom_call.1} parent=43 // pred_check_branch
          %838 = sbr.rel (%p836) target = $region76
        $region75: #{tpu_custom_call.1} parent=43 // pred_region
          %v839 = vld [vmem:[#allocation2] sm:$0xff]
          %v840 = vld [vmem:[#allocation12] sm:$0x1]
          %v842 = vlaneseq
          %v843 = vshrl.u32 %v842, 7
          %v844 = vsub.s32 0, %v843
          %v845 = vrot.slane %v840, %v844
          %v847 = vadd.f32 %v839, %v845
          %848 = vst.msk [vmem:[%s358] sm:$0xff] %vm379, %v847
        $region76: #{tpu_custom_call.1} parent=43 // pred_fallthru
          _
        %s849 = sand.u32 %s186, 1
        %s850 = scalar_lea.sflag [#allocation5], %s849
        %s851 = sand.u32 %s186, 1
        %s852 = smul.addr %s851, 8
        %s853 = scalar_lea.vmem [#allocation14], %s852
        // Predicated region
        $region77: #{tpu_custom_call.1} parent=43 // pred_check
          %p854 = pneg %p196
        $region78: #{tpu_custom_call.1} parent=43 // pred_check_branch
          %856 = sbr.rel (%p854) target = $region80
        $region79: #{tpu_custom_call.1} parent=43 // pred_region
          %s858 = ssub.s32 128, 128
          %859 = vsyncadd %s850, %s858
          %s860 = sadd.s32 %s32, %s31
          %s861 = smul.addr %s860, 128
          %s862 = scalar_lea.hbm %s6, %s861
          %s864 = sshll.u32 %s853, 4
          %s865 = int_to_ptr.vmem [resolvable:$true] %s864
          %867 = dma.vmem_to_hbm [thread:$0]  %s865, 128, %s862, %s850
        $region80: #{tpu_custom_call.1} parent=43 // pred_fallthru
          _
      $region44: #{tpu_custom_call.1} parent=5 // pred_fallthru
        _
      %p868 = scmp.le.s32.totalorder 2, %s21
      // Predicated region
      $region81: #{tpu_custom_call.1} parent=5 // pred_check
        %p869 = pneg %p868
      $region82: #{tpu_custom_call.1} parent=5 // pred_check_branch
        %871 = sbr.rel (%p869) target = $region84
      $region83: #{tpu_custom_call.1} parent=5 // pred_region
        %s872 = ssub.s32 %s21, 2
        // Predicated region
        $region85: #{tpu_custom_call.1} parent=83 // pred_check
          %p873 = pneg %p202
        $region86: #{tpu_custom_call.1} parent=83 // pred_check_branch
          %875 = sbr.rel (%p873) target = $region88
        $region87: #{tpu_custom_call.1} parent=83 // pred_region
          %s876 = sand.u32 %s187, 1
          %s877 = scalar_lea.sflag [#allocation5], %s876
          %s878 = sand.u32 %s187, 1
          %s879 = smul.addr %s878, 8
          %s880 = scalar_lea.vmem [#allocation14], %s879
          %881 = dma.done %s877, 128
        $region88: #{tpu_custom_call.1} parent=83 // pred_fallthru
          _
      $region84: #{tpu_custom_call.1} parent=5 // pred_fallthru
        _
    $region6: #{tpu_custom_call.1} parent=1 // loop_footer
      %s25 = sadd.s32 1, %s21
    $region7: #{tpu_custom_call.1} parent=1 // loop_footer_branch
      %20 = sbr.rel target = $region3
    $region8: #{tpu_custom_call.1} parent=1 // loop_exit
      _
    %882 = vsyncpa [#allocation4], 1
    %s883 = scalar_lea.sflag [#allocation4], 1
    %884 = vsyncpa %s883, 1
    %885 = vsyncpa [#allocation7], 1
    %886 = vsyncpa [#allocation10], 1
    %887 = vsyncpa [#allocation13], 1
    %888 = vsyncpa [#allocation5], 1
    %s889 = scalar_lea.sflag [#allocation5], 1
    %890 = vsyncpa %s889, 1

</llo_original>
